<compile_context>
chip_gen: v7x
topology: tpu7x:2x2x1
jax: 0.10.0
libtpu: 0.0.40
codegen_flags: <defaults>
</compile_context>

<pallas_src>
import functools
import numpy as np
import jax
import jax.numpy as jnp
from jax import lax
from jax.experimental import pallas as pl
from jax.experimental.pallas import tpu as pltpu


def _causal_attention_kernel(x_ref, wqkv_ref, bqkv_ref, wp_ref, bp_ref, o_ref, acc_ref,
                             *, n_heads, embed_channels, out_channels, mask_current):
    E, O = embed_channels, out_channels
    x = x_ref[...]                                   # (C, S), channel-first, f32
    S = x.shape[1]
    dh = E // n_heads
    dv = O // n_heads
    scale = 1.0 / np.sqrt(dh)

    # Fused q/k/v 1x1-conv projection: (2E+O, C) @ (C, S) -> (2E+O, S), lane-dense in S.
    qkv = jnp.dot(wqkv_ref[...], x, preferred_element_type=jnp.float32) + bqkv_ref[...]
    q_t = qkv[:E, :]                                 # (E, S)
    k_t = qkv[E:2 * E, :]                            # (E, S)
    v_t = qkv[2 * E:, :]                             # (O, S)

    # Single transpose of q for all heads (scores need q row-major in S).
    q = q_t.T                                        # (S, E)

    # Additive causal mask, finite (-1e30) so exp/max never see inf-inf.
    row = lax.broadcasted_iota(jnp.int32, (S, S), 0)
    col = lax.broadcasted_iota(jnp.int32, (S, S), 1)
    keep = (row - col) >= int(mask_current)          # (S, S) bool
    bias = jnp.where(keep, 0.0, -1e30).astype(jnp.float32)

    for h in range(n_heads):                         # static, small
        qh = q[:, h * dh:(h + 1) * dh]               # (S, dh)
        kh_t = k_t[h * dh:(h + 1) * dh, :]           # (dh, S)
        vh_t = v_t[h * dv:(h + 1) * dv, :]           # (dv, S)

        # scores (S, S) = qh @ kh  (contraction dh)
        s = jnp.dot(qh, kh_t, preferred_element_type=jnp.float32) * scale + bias
        m = jnp.max(s, axis=-1, keepdims=True)
        e = jnp.exp(s - m)
        denom = jnp.sum(e, axis=-1, keepdims=True)
        p = e * pl.reciprocal(denom, approx=True)    # EUP reciprocal, softmax stays f32
        if mask_current:
            # Only needed for the fully-masked first row (matches masked_fill(..., 0)).
            p = jnp.where(keep, p, 0.0)

        # PV on the MXU in bf16 with f32 accumulation:
        # (dv, Sk) x (Sq, Sk) contracted over Sk -> (dv, Sq), channel-first.
        out_h = lax.dot_general(
            vh_t.astype(jnp.bfloat16), p.astype(jnp.bfloat16),
            (((1,), (1,)), ((), ())),
            preferred_element_type=jnp.float32)
        acc_ref[h * dv:(h + 1) * dv, :] = out_h      # static sublane-slice write

    # Output projection (1x1 conv), channel-first: (O, O) @ (O, S) -> (O, S).
    proj = jnp.dot(wp_ref[...], acc_ref[...], preferred_element_type=jnp.float32) + bp_ref[...]
    o_ref[...] = proj.astype(o_ref.dtype)            # lane-dense (unmasked) store


def causal_attention_pallas(x_nchw, params, *, n_heads, embed_channels, out_channels,
                            mask_current=False):
    """x_nchw: (N, C, H, W) float32. params in PyTorch 1x1-conv layout:
       wq (E, C), bq (E,), wkv (E+O, C), bkv (E+O,), wp (O, O), bp (O,).
       Returns (N, out_channels, H, W)."""
    N, C, H, W = x_nchw.shape
    S = H * W
    E, O = embed_channels, out_channels
    wq, bq, wkv, bkv, wp, bp = params

    # Fuse q and kv projections into a single weight/bias.
    w_qkv = jnp.concatenate([wq, wkv], axis=0)                       # (2E+O, C)
    b_qkv = jnp.concatenate([bq, bkv], axis=0).reshape(2 * E + O, 1)  # (2E+O, 1)
    bp_col = bp.reshape(O, 1)

    x_ncs = x_nchw.reshape(N, C, S)                                  # channel-first, no transpose

    kernel = functools.partial(
        _causal_attention_kernel,
        n_heads=n_heads, embed_channels=E, out_channels=O, mask_current=mask_current)

    out_nos = pl.pallas_call(
        kernel,
        out_shape=jax.ShapeDtypeStruct((N, O, S), jnp.float32),
        grid=(N,),
        in_specs=[
            pl.BlockSpec((pl.Squeezed(), C, S), lambda i: (i, 0, 0)),   # x (C, S)
            pl.BlockSpec((2 * E + O, C), lambda i: (0, 0)),             # fused W_qkv
            pl.BlockSpec((2 * E + O, 1), lambda i: (0, 0)),             # fused b_qkv
            pl.BlockSpec((O, O), lambda i: (0, 0)),                     # W_proj
            pl.BlockSpec((O, 1), lambda i: (0, 0)),                     # b_proj
        ],
        out_specs=pl.BlockSpec((pl.Squeezed(), O, S), lambda i: (i, 0, 0)),
        scratch_shapes=[pltpu.VMEM((O, S), jnp.float32)],               # per-head accumulator
        compiler_params=pltpu.CompilerParams(dimension_semantics=("parallel",)),
    )(x_ncs, w_qkv, b_qkv, wp, bp_col)

    # Lane-dense (N, O, S) output reshapes straight to NCHW — no transpose.
    return out_nos.reshape(N, O, H, W)


def _reference_jax(x_nchw, params, *, n_heads, embed_channels, out_channels, mask_current=False):
    """Pure-JAX reference mirroring the PyTorch module semantics."""
    N, C, H, W = x_nchw.shape
    S = H * W
    wq, bq, wkv, bkv, wp, bp = params
    E, O = embed_channels, out_channels
    x = x_nchw.reshape(N, C, S)                                       # (N, C, S)
    q = jnp.einsum("ec,ncs->nes", wq, x) + bq[None, :, None]          # (N, E, S)
    kv = jnp.einsum("fc,ncs->nfs", wkv, x) + bkv[None, :, None]       # (N, E+O, S)
    k, v = kv[:, :E], kv[:, E:]
    dh, dv = E // n_heads, O // n_heads

    def to_multihead(t, d):
        # (N, heads*d, S) -> (N, heads, S, d); matches PyTorch _to_multihead.
        return jnp.transpose(t.reshape(N, n_heads, d, S), (0, 1, 3, 2))

    qh, kh, vh = to_multihead(q, dh), to_multihead(k, dh), to_multihead(v, dv)
    attn = jnp.einsum("nhqd,nhkd->nhqk", qh, kh) / np.sqrt(dh)
    row = np.arange(S)[:, None]
    col = np.arange(S)[None, :]
    keep = (row - col) >= int(mask_current)
    attn = jnp.where(keep, attn, -jnp.inf)
    attn = jax.nn.softmax(attn, axis=-1)
    attn = jnp.where(keep, attn, 0.0)
    out = jnp.einsum("nhqk,nhkd->nhqd", attn, vh)                     # (N, heads, S, dv)
    out = jnp.transpose(out, (0, 1, 3, 2)).reshape(N, O, S)           # channel = h*dv + d
    proj = jnp.einsum("oc,ncs->nos", wp, out) + bp[None, :, None]     # (N, O, S)
    return proj.reshape(N, O, H, W)


if __name__ == "__main__":
    # Module config (nn.Conv2d path, n_dims=2)
    in_channels = 4
    embed_channels = 8
    out_channels = 8
    n_heads = 2
    mask_current = False

    N, H, W = 2, 16, 16

    key = jax.random.PRNGKey(0)
    k_x, k_wq, k_bq, k_wkv, k_bkv, k_wp, k_bp = jax.random.split(key, 7)

    x = jax.random.normal(k_x, (N, in_channels, H, W), dtype=jnp.float32)

    # Parameters in PyTorch 1x1-conv layout (C_out, C_in) with (C_out,) biases.
    def init_w(k, cout, cin):
        return jax.random.normal(k, (cout, cin), dtype=jnp.float32) / np.sqrt(cin)

    wq = init_w(k_wq, embed_channels, in_channels)
    bq = jax.random.normal(k_bq, (embed_channels,), dtype=jnp.float32) * 0.1
    wkv = init_w(k_wkv, embed_channels + out_channels, in_channels)
    bkv = jax.random.normal(k_bkv, (embed_channels + out_channels,), dtype=jnp.float32) * 0.1
    wp = init_w(k_wp, out_channels, out_channels)
    bp = jax.random.normal(k_bp, (out_channels,), dtype=jnp.float32) * 0.1
    params = (wq, bq, wkv, bkv, wp, bp)

    out = causal_attention_pallas(
        x, params,
        n_heads=n_heads,
        embed_channels=embed_channels,
        out_channels=out_channels,
        mask_current=mask_current,
    )
    out = jax.block_until_ready(out)
    assert out.shape == (N, out_channels, H, W), out.shape

    ref = _reference_jax(
        x, params,
        n_heads=n_heads,
        embed_channels=embed_channels,
        out_channels=out_channels,
        mask_current=mask_current,
    )
    ref = jax.block_until_ready(ref)
    # Tolerance accounts for bf16 MXU operands on the PV matmul + approx reciprocal.
    np.testing.assert_allclose(np.asarray(out), np.asarray(ref), rtol=2e-2, atol=2e-2)

    print("KERNEL_OK")
</pallas_src>

<mosaic_0001>
module attributes {stable_mosaic.version = 11 : i64} {
  func.func @_causal_attention_kernel(%arg0: i32, %arg1: memref<1x4x256xf32, #tpu.memory_space<vmem>>, %arg2: memref<24x4xf32, #tpu.memory_space<vmem>>, %arg3: memref<24x1xf32, #tpu.memory_space<vmem>>, %arg4: memref<8x8xf32, #tpu.memory_space<vmem>>, %arg5: memref<8x1xf32, #tpu.memory_space<vmem>>, %arg6: memref<1x8x256xf32, #tpu.memory_space<vmem>>, %arg7: memref<8x256xf32, #tpu.memory_space<vmem>>) attributes {dimension_semantics = [#tpu.dimension_semantics<parallel>], iteration_bounds = array<i64: 2>, scalar_prefetch = 0 : i64, scratch_operands = 1 : i64, tpu.core_type = #tpu.core_type<tc>, window_params = [{transform_indices = @transform_0, window_bounds = array<i64: 1, 4, 256>}, {pipeline_mode = #tpu.pipeline_mode<synchronous>, transform_indices = @transform_1, window_bounds = array<i64: 24, 4>}, {pipeline_mode = #tpu.pipeline_mode<synchronous>, transform_indices = @transform_2, window_bounds = array<i64: 24, 1>}, {pipeline_mode = #tpu.pipeline_mode<synchronous>, transform_indices = @transform_3, window_bounds = array<i64: 8, 8>}, {pipeline_mode = #tpu.pipeline_mode<synchronous>, transform_indices = @transform_4, window_bounds = array<i64: 8, 1>}, {transform_indices = @transform_5, window_bounds = array<i64: 1, 8, 256>}]} {
    %c0 = arith.constant 0 : index
    %c0_0 = arith.constant 0 : index
    %c0_1 = arith.constant 0 : index
    %0 = vector.load %arg1[%c0, %c0_0, %c0_1] : memref<1x4x256xf32, #tpu.memory_space<vmem>>, vector<1x4x256xf32>
    %1 = vector.shape_cast %0 : vector<1x4x256xf32> to vector<4x256xf32>
    %c0_2 = arith.constant 0 : index
    %c0_3 = arith.constant 0 : index
    %2 = vector.load %arg2[%c0_2, %c0_3] : memref<24x4xf32, #tpu.memory_space<vmem>>, vector<24x4xf32>
    %cst = arith.constant dense<0.000000e+00> : vector<24x256xf32>
    %3 = tpu.matmul %2, %1, %cst {dimension_numbers = #tpu.dot_dimension_numbers<[1], [0], [0], [1], [0, 0, 1, 1], [], []>} : vector<24x4xf32>, vector<4x256xf32>, vector<24x256xf32> -> vector<24x256xf32>
    %c0_4 = arith.constant 0 : index
    %c0_5 = arith.constant 0 : index
    %4 = vector.load %arg3[%c0_4, %c0_5] : memref<24x1xf32, #tpu.memory_space<vmem>>, vector<24x1xf32>
    %5 = vector.broadcast %4 : vector<24x1xf32> to vector<24x256xf32>
    %6 = arith.addf %3, %5 : vector<24x256xf32>
    %7 = vector.extract_strided_slice %6 {offsets = [0, 0], sizes = [8, 256], strides = [1, 1]} : vector<24x256xf32> to vector<8x256xf32>
    %8 = vector.extract_strided_slice %6 {offsets = [8, 0], sizes = [8, 256], strides = [1, 1]} : vector<24x256xf32> to vector<8x256xf32>
    %9 = vector.extract_strided_slice %6 {offsets = [16, 0], sizes = [8, 256], strides = [1, 1]} : vector<24x256xf32> to vector<8x256xf32>
    %10 = tpu.transpose %7, [1, 0] : vector<8x256xf32> -> vector<256x8xf32>
    %11 = tpu.iota {dimensions = array<i32: 0>} : vector<256x256xi32>
    %12 = tpu.iota {dimensions = array<i32: 1>} : vector<256x256xi32>
    %13 = arith.subi %11, %12 : vector<256x256xi32>
    %c0_i32 = arith.constant 0 : i32
    %14 = vector.broadcast %c0_i32 : i32 to vector<256x256xi32>
    %15 = arith.cmpi sge, %13, %14 : vector<256x256xi32>
    %cst_6 = arith.constant 0.000000e+00 : f32
    %cst_7 = arith.constant -1.000000e+30 : f32
    %16 = vector.broadcast %cst_6 : f32 to vector<256x256xf32>
    %17 = vector.broadcast %cst_7 : f32 to vector<256x256xf32>
    %18 = arith.select %15, %16, %17 : vector<256x256xi1>, vector<256x256xf32>
    %19 = vector.extract_strided_slice %10 {offsets = [0, 0], sizes = [256, 4], strides = [1, 1]} : vector<256x8xf32> to vector<256x4xf32>
    %20 = vector.extract_strided_slice %8 {offsets = [0, 0], sizes = [4, 256], strides = [1, 1]} : vector<8x256xf32> to vector<4x256xf32>
    %21 = vector.extract_strided_slice %9 {offsets = [0, 0], sizes = [4, 256], strides = [1, 1]} : vector<8x256xf32> to vector<4x256xf32>
    %cst_8 = arith.constant dense<0.000000e+00> : vector<256x256xf32>
    %22 = tpu.matmul %19, %20, %cst_8 {dimension_numbers = #tpu.dot_dimension_numbers<[1], [0], [0], [1], [0, 0, 1, 1], [], []>} : vector<256x4xf32>, vector<4x256xf32>, vector<256x256xf32> -> vector<256x256xf32>
    %cst_9 = arith.constant 5.000000e-01 : f32
    %23 = vector.broadcast %cst_9 : f32 to vector<256x256xf32>
    %24 = arith.mulf %22, %23 : vector<256x256xf32>
    %25 = arith.addf %24, %18 : vector<256x256xf32>
    %cst_10 = arith.constant dense<0xFF800000> : vector<256xf32>
    %26 = vector.multi_reduction <maximumf>, %25, %cst_10 [1] : vector<256x256xf32> to vector<256xf32>
    %27 = vector.shape_cast %26 : vector<256xf32> to vector<256x1xf32>
    %28 = vector.broadcast %27 : vector<256x1xf32> to vector<256x256xf32>
    %29 = arith.subf %25, %28 : vector<256x256xf32>
    %30 = math.exp %29 : vector<256x256xf32>
    %cst_11 = arith.constant dense<0.000000e+00> : vector<256xf32>
    %31 = vector.multi_reduction <add>, %30, %cst_11 [1] : vector<256x256xf32> to vector<256xf32>
    %32 = vector.shape_cast %31 : vector<256xf32> to vector<256x1xf32>
    %33 = tpu.reciprocal %32 {approx = true} : vector<256x1xf32> -> vector<256x1xf32>
    %34 = vector.broadcast %33 : vector<256x1xf32> to vector<256x256xf32>
    %35 = arith.mulf %30, %34 : vector<256x256xf32>
    %36 = arith.truncf %21 : vector<4x256xf32> to vector<4x256xbf16>
    %37 = arith.truncf %35 : vector<256x256xf32> to vector<256x256xbf16>
    %cst_12 = arith.constant dense<0.000000e+00> : vector<4x256xf32>
    %38 = tpu.matmul %36, %37, %cst_12 {dimension_numbers = #tpu.dot_dimension_numbers<[1], [1], [0], [0], [0, 0, 1, 0], [], []>} : vector<4x256xbf16>, vector<256x256xbf16>, vector<4x256xf32> -> vector<4x256xf32>
    %c0_13 = arith.constant 0 : index
    %c0_14 = arith.constant 0 : index
    %39 = vector.load %arg7[%c0_13, %c0_14] : memref<8x256xf32, #tpu.memory_space<vmem>>, vector<4x256xf32>
    tpu.vector_store %arg7[%c0_13, %c0_14], %38 {strides = array<i32>} : memref<8x256xf32, #tpu.memory_space<vmem>>, vector<4x256xf32>,
    %40 = vector.extract_strided_slice %10 {offsets = [0, 4], sizes = [256, 4], strides = [1, 1]} : vector<256x8xf32> to vector<256x4xf32>
    %41 = vector.extract_strided_slice %8 {offsets = [4, 0], sizes = [4, 256], strides = [1, 1]} : vector<8x256xf32> to vector<4x256xf32>
    %42 = vector.extract_strided_slice %9 {offsets = [4, 0], sizes = [4, 256], strides = [1, 1]} : vector<8x256xf32> to vector<4x256xf32>
    %cst_15 = arith.constant dense<0.000000e+00> : vector<256x256xf32>
    %43 = tpu.matmul %40, %41, %cst_15 {dimension_numbers = #tpu.dot_dimension_numbers<[1], [0], [0], [1], [0, 0, 1, 1], [], []>} : vector<256x4xf32>, vector<4x256xf32>, vector<256x256xf32> -> vector<256x256xf32>
    %cst_16 = arith.constant 5.000000e-01 : f32
    %44 = vector.broadcast %cst_16 : f32 to vector<256x256xf32>
    %45 = arith.mulf %43, %44 : vector<256x256xf32>
    %46 = arith.addf %45, %18 : vector<256x256xf32>
    %cst_17 = arith.constant dense<0xFF800000> : vector<256xf32>
    %47 = vector.multi_reduction <maximumf>, %46, %cst_17 [1] : vector<256x256xf32> to vector<256xf32>
    %48 = vector.shape_cast %47 : vector<256xf32> to vector<256x1xf32>
    %49 = vector.broadcast %48 : vector<256x1xf32> to vector<256x256xf32>
    %50 = arith.subf %46, %49 : vector<256x256xf32>
    %51 = math.exp %50 : vector<256x256xf32>
    %cst_18 = arith.constant dense<0.000000e+00> : vector<256xf32>
    %52 = vector.multi_reduction <add>, %51, %cst_18 [1] : vector<256x256xf32> to vector<256xf32>
    %53 = vector.shape_cast %52 : vector<256xf32> to vector<256x1xf32>
    %54 = tpu.reciprocal %53 {approx = true} : vector<256x1xf32> -> vector<256x1xf32>
    %55 = vector.broadcast %54 : vector<256x1xf32> to vector<256x256xf32>
    %56 = arith.mulf %51, %55 : vector<256x256xf32>
    %57 = arith.truncf %42 : vector<4x256xf32> to vector<4x256xbf16>
    %58 = arith.truncf %56 : vector<256x256xf32> to vector<256x256xbf16>
    %cst_19 = arith.constant dense<0.000000e+00> : vector<4x256xf32>
    %59 = tpu.matmul %57, %58, %cst_19 {dimension_numbers = #tpu.dot_dimension_numbers<[1], [1], [0], [0], [0, 0, 1, 0], [], []>} : vector<4x256xbf16>, vector<256x256xbf16>, vector<4x256xf32> -> vector<4x256xf32>
    %c4 = arith.constant 4 : index
    %c0_20 = arith.constant 0 : index
    %60 = vector.load %arg7[%c4, %c0_20] : memref<8x256xf32, #tpu.memory_space<vmem>>, vector<4x256xf32>
    tpu.vector_store %arg7[%c4, %c0_20], %59 {strides = array<i32>} : memref<8x256xf32, #tpu.memory_space<vmem>>, vector<4x256xf32>,
    %c0_21 = arith.constant 0 : index
    %c0_22 = arith.constant 0 : index
    %61 = vector.load %arg4[%c0_21, %c0_22] : memref<8x8xf32, #tpu.memory_space<vmem>>, vector<8x8xf32>
    %c0_23 = arith.constant 0 : index
    %c0_24 = arith.constant 0 : index
    %62 = vector.load %arg7[%c0_23, %c0_24] : memref<8x256xf32, #tpu.memory_space<vmem>>, vector<8x256xf32>
    %cst_25 = arith.constant dense<0.000000e+00> : vector<8x256xf32>
    %63 = tpu.matmul %61, %62, %cst_25 {dimension_numbers = #tpu.dot_dimension_numbers<[1], [0], [0], [1], [0, 0, 1, 1], [], []>} : vector<8x8xf32>, vector<8x256xf32>, vector<8x256xf32> -> vector<8x256xf32>
    %c0_26 = arith.constant 0 : index
    %c0_27 = arith.constant 0 : index
    %64 = vector.load %arg5[%c0_26, %c0_27] : memref<8x1xf32, #tpu.memory_space<vmem>>, vector<8x1xf32>
    %65 = vector.broadcast %64 : vector<8x1xf32> to vector<8x256xf32>
    %66 = arith.addf %63, %65 : vector<8x256xf32>
    %c0_28 = arith.constant 0 : index
    %c0_29 = arith.constant 0 : index
    %c0_30 = arith.constant 0 : index
    %67 = vector.load %arg6[%c0_28, %c0_29, %c0_30] : memref<1x8x256xf32, #tpu.memory_space<vmem>>, vector<1x8x256xf32>
    %68 = vector.shape_cast %67 : vector<1x8x256xf32> to vector<8x256xf32>
    %69 = vector.shape_cast %66 : vector<8x256xf32> to vector<1x8x256xf32>
    tpu.vector_store %arg6[%c0_28, %c0_29, %c0_30], %69 {strides = array<i32>} : memref<1x8x256xf32, #tpu.memory_space<vmem>>, vector<1x8x256xf32>,
    return
  }
  func.func @transform_0(%arg0: i32) -> (i32, i32, i32) {
    %c0_i32 = arith.constant 0 : i32
    %c0_i32_0 = arith.constant 0 : i32
    %c0_i32_1 = arith.constant 0 : i32
    return %arg0, %c0_i32, %c0_i32_0 : i32, i32, i32
  }
  func.func @transform_1(%arg0: i32) -> (i32, i32) {
    %c0_i32 = arith.constant 0 : i32
    %c0_i32_0 = arith.constant 0 : i32
    %c0_i32_1 = arith.constant 0 : i32
    return %c0_i32, %c0_i32_0 : i32, i32
  }
  func.func @transform_2(%arg0: i32) -> (i32, i32) {
    %c0_i32 = arith.constant 0 : i32
    %c0_i32_0 = arith.constant 0 : i32
    %c0_i32_1 = arith.constant 0 : i32
    return %c0_i32, %c0_i32_0 : i32, i32
  }
  func.func @transform_3(%arg0: i32) -> (i32, i32) {
    %c0_i32 = arith.constant 0 : i32
    %c0_i32_0 = arith.constant 0 : i32
    %c0_i32_1 = arith.constant 0 : i32
    return %c0_i32, %c0_i32_0 : i32, i32
  }
  func.func @transform_4(%arg0: i32) -> (i32, i32) {
    %c0_i32 = arith.constant 0 : i32
    %c0_i32_0 = arith.constant 0 : i32
    %c0_i32_1 = arith.constant 0 : i32
    return %c0_i32, %c0_i32_0 : i32, i32
  }
  func.func @transform_5(%arg0: i32) -> (i32, i32, i32) {
    %c0_i32 = arith.constant 0 : i32
    %c0_i32_0 = arith.constant 0 : i32
    %c0_i32_1 = arith.constant 0 : i32
    return %arg0, %c0_i32, %c0_i32_0 : i32, i32, i32
  }
}

</mosaic_0001>

<llo_original>
// kernel: tpu_custom_call.1
$region0: #{tpu_custom_call.1}
  #allocation0 [shape = 'u32[]', space=smem, size = 0x4, offset = 0x4, fixed_abs, tag = 'smem constant byte address 0x4 - core index']
  #allocation1 [shape = 'u32[144,128]{1,0:T(1,128)}', space=vmem, size = 0x12000, scoped, tag = 'internal scratch']
  #allocation2 [shape = 'f32[8,256]{1,0:T(8,128)}', space=vmem, size = 0x2000, scoped, tag = 'scratch operand']
  %s0 = inlined_call_operand.vmem [shape: f32[2,4,256], index: 0, kind: input, shape index: {}]
  %s1 = inlined_call_operand.vmem [shape: f32[24,4], index: 1, kind: input, shape index: {}]
  %s2 = inlined_call_operand.vmem [shape: f32[24,1], index: 2, kind: input, shape index: {}]
  %s3 = inlined_call_operand.vmem [shape: f32[8,8], index: 3, kind: input, shape index: {}]
  %s4 = inlined_call_operand.vmem [shape: f32[8,1], index: 4, kind: input, shape index: {}]
  %s5 = inlined_call_operand.hbm [shape: f32[2,8,256], index: 5, kind: output, shape index: {}]
  %s6 = sld [smem:[#allocation0]]
  $region53: #{tpu_custom_call.1} parent=0
    _
  %s8 = ssub.s32 1, %s6
  %s9 = scalar_select 0, %s8, %s6
  $region1: #{tpu_custom_call.1} parent=0
    #allocation3 [shape = 'u8[16384]{0}', space=vmem, size = 0x4000, scoped, tag = 'output window, operand 0']
    #allocation4 [shape = 's32[2]{0}', space=sflag, size = 0x8, scoped, tag = 'scoped memory for tpu_custom_call.1']
    %10 = vsyncpa [#allocation4], 0
    %s11 = scalar_lea.sflag [#allocation4], 1
    %12 = vsyncpa %s11, 0
    loop: start=0, step=1, limit=4
    $region2: #{tpu_custom_call.1} parent=1 // loop_pre_header
      _
    $region3: #{tpu_custom_call.1} parent=1 // loop_header
      %s14 = sphi 0, %s18
      %p15 = scmp.ge.s32.totalorder %s14, 4
      %s24 = sphi 0, %s26
      %s27 = sphi 0, %s24
      %s28 = sphi 0, %s27
      %s44 = sphi 0, %s28
      %s48 = sphi 0, %s48
      %s50 = sphi 0, %s48
      %s51 = sphi 0, %s50
      %s65 = sphi 0, %s51
      %s69 = sphi 0, %s69
      %s71 = sphi 0, %s69
      %s72 = sphi 0, %s71
      %s86 = sphi 0, %s72
      %s90 = sphi 0, %s90
      %s92 = sphi 0, %s90
      %s93 = sphi 0, %s92
      %s107 = sphi 0, %s93
      %s111 = sphi 0, %s111
      %s113 = sphi 0, %s111
      %s114 = sphi 0, %s113
      %s128 = sphi 0, %s114
      %s134 = sphi 0, %s136
      %s137 = sphi 0, %s134
      %s138 = sphi 0, %s137
      %s154 = sphi 0, %s138
    $region4: #{tpu_custom_call.1} parent=1 // loop_header_branch
      %17 = sbr.rel (%p15) target = $region8
    $region5: #{tpu_custom_call.1} parent=1 // loop_body
      %s19 = ssub.s32 %s14, 1
      %s20 = ssub.s32 %s14, 2
      %s21 = sadd.s32 %s14, 1
      %s22 = ssub.s32 %s14, %s21
      %p23 = scmp.eq.s32.totalorder %s22, 0
      %s25 = sadd.s32 %s24, 1
      %s26 = scalar_select %p23, %s24, %s25
      %p29 = pneg %p23
      %p30 = scmp.eq.s32.totalorder %s14, 1
      %p31 = por %p29, %p30
      %p32 = scmp.ne.s32.totalorder %s24, %s27
      %p33 = scmp.eq.s32.totalorder %s14, 0
      %p34 = por %p32, %p33
      %p35 = scmp.ne.s32.totalorder %s24, %s27
      %p36 = scmp.eq.s32.totalorder %s19, 1
      %p37 = por %p35, %p36
      %p38 = scmp.ne.s32.totalorder %s27, %s28
      %p39 = scmp.eq.s32.totalorder %s19, 0
      %p40 = por %p38, %p39
      %p41 = scmp.ne.s32.totalorder %s27, %s28
      %p42 = scmp.eq.s32.totalorder %s20, 1
      %p43 = por %p41, %p42
      %p45 = scmp.ne.s32.totalorder %s28, %s44
      %p46 = scmp.eq.s32.totalorder %s20, 0
      %p47 = por %p45, %p46
      %s49 = sadd.s32 %s48, 1
      %p52 = scmp.eq.s32.totalorder %s14, 1
      %p53 = scmp.ne.s32.totalorder %s48, %s50
      %p54 = scmp.eq.s32.totalorder %s14, 0
      %p55 = por %p53, %p54
      %p56 = scmp.ne.s32.totalorder %s48, %s50
      %p57 = scmp.eq.s32.totalorder %s19, 1
      %p58 = por %p56, %p57
      %p59 = scmp.ne.s32.totalorder %s50, %s51
      %p60 = scmp.eq.s32.totalorder %s19, 0
      %p61 = por %p59, %p60
      %p62 = scmp.ne.s32.totalorder %s50, %s51
      %p63 = scmp.eq.s32.totalorder %s20, 1
      %p64 = por %p62, %p63
      %p66 = scmp.ne.s32.totalorder %s51, %s65
      %p67 = scmp.eq.s32.totalorder %s20, 0
      %p68 = por %p66, %p67
      %s70 = sadd.s32 %s69, 1
      %p73 = scmp.eq.s32.totalorder %s14, 1
      %p74 = scmp.ne.s32.totalorder %s69, %s71
      %p75 = scmp.eq.s32.totalorder %s14, 0
      %p76 = por %p74, %p75
      %p77 = scmp.ne.s32.totalorder %s69, %s71
      %p78 = scmp.eq.s32.totalorder %s19, 1
      %p79 = por %p77, %p78
      %p80 = scmp.ne.s32.totalorder %s71, %s72
      %p81 = scmp.eq.s32.totalorder %s19, 0
      %p82 = por %p80, %p81
      %p83 = scmp.ne.s32.totalorder %s71, %s72
      %p84 = scmp.eq.s32.totalorder %s20, 1
      %p85 = por %p83, %p84
      %p87 = scmp.ne.s32.totalorder %s72, %s86
      %p88 = scmp.eq.s32.totalorder %s20, 0
      %p89 = por %p87, %p88
      %s91 = sadd.s32 %s90, 1
      %p94 = scmp.eq.s32.totalorder %s14, 1
      %p95 = scmp.ne.s32.totalorder %s90, %s92
      %p96 = scmp.eq.s32.totalorder %s14, 0
      %p97 = por %p95, %p96
      %p98 = scmp.ne.s32.totalorder %s90, %s92
      %p99 = scmp.eq.s32.totalorder %s19, 1
      %p100 = por %p98, %p99
      %p101 = scmp.ne.s32.totalorder %s92, %s93
      %p102 = scmp.eq.s32.totalorder %s19, 0
      %p103 = por %p101, %p102
      %p104 = scmp.ne.s32.totalorder %s92, %s93
      %p105 = scmp.eq.s32.totalorder %s20, 1
      %p106 = por %p104, %p105
      %p108 = scmp.ne.s32.totalorder %s93, %s107
      %p109 = scmp.eq.s32.totalorder %s20, 0
      %p110 = por %p108, %p109
      %s112 = sadd.s32 %s111, 1
      %p115 = scmp.eq.s32.totalorder %s14, 1
      %p116 = scmp.ne.s32.totalorder %s111, %s113
      %p117 = scmp.eq.s32.totalorder %s14, 0
      %p118 = por %p116, %p117
      %p119 = scmp.ne.s32.totalorder %s111, %s113
      %p120 = scmp.eq.s32.totalorder %s19, 1
      %p121 = por %p119, %p120
      %p122 = scmp.ne.s32.totalorder %s113, %s114
      %p123 = scmp.eq.s32.totalorder %s19, 0
      %p124 = por %p122, %p123
      %p125 = scmp.ne.s32.totalorder %s113, %s114
      %p126 = scmp.eq.s32.totalorder %s20, 1
      %p127 = por %p125, %p126
      %p129 = scmp.ne.s32.totalorder %s114, %s128
      %p130 = scmp.eq.s32.totalorder %s20, 0
      %p131 = por %p129, %p130
      %s132 = ssub.s32 %s14, %s21
      %p133 = scmp.eq.s32.totalorder %s132, 0
      %s135 = sadd.s32 %s134, 1
      %s136 = scalar_select %p133, %s134, %s135
      %p139 = pneg %p133
      %p140 = scmp.eq.s32.totalorder %s14, 1
      %p141 = por %p139, %p140
      %p142 = scmp.ne.s32.totalorder %s134, %s137
      %p143 = scmp.eq.s32.totalorder %s14, 0
      %p144 = por %p142, %p143
      %p145 = scmp.ne.s32.totalorder %s134, %s137
      %p146 = scmp.eq.s32.totalorder %s19, 1
      %p147 = por %p145, %p146
      %p148 = scmp.ne.s32.totalorder %s137, %s138
      %p149 = scmp.eq.s32.totalorder %s19, 0
      %p150 = por %p148, %p149
      %p151 = scmp.ne.s32.totalorder %s137, %s138
      %p152 = scmp.eq.s32.totalorder %s20, 1
      %p153 = por %p151, %p152
      %p155 = scmp.ne.s32.totalorder %s138, %s154
      %p156 = scmp.eq.s32.totalorder %s20, 0
      %p157 = por %p155, %p156
      %p158 = scmp.le.s32.totalorder 1, %s14
      %p159 = scmp.lt.s32.totalorder %s14, 3
      %p160 = pnand %p158, %p159
      %p161 = pneg %p160
      // Predicated region
      $region9: #{tpu_custom_call.1} parent=5 // pred_check
        _
      $region10: #{tpu_custom_call.1} parent=5 // pred_check_branch
        %163 = sbr.rel (%p160) target = $region12
      $region11: #{tpu_custom_call.1} parent=5 // pred_region
        %s164 = ssub.s32 %s14, 1
        // Predicated region
        $region13: #{tpu_custom_call.1} parent=11 // pred_check
          %p165 = pneg %p61
        $region14: #{tpu_custom_call.1} parent=11 // pred_check_branch
          %167 = sbr.rel (%p165) target = $region16
        $region15: #{tpu_custom_call.1} parent=11 // pred_region
          _
        $region16: #{tpu_custom_call.1} parent=11 // pred_fallthru
          _
        // Predicated region
        $region17: #{tpu_custom_call.1} parent=11 // pred_check
          %p168 = pneg %p82
        $region18: #{tpu_custom_call.1} parent=11 // pred_check_branch
          %170 = sbr.rel (%p168) target = $region20
        $region19: #{tpu_custom_call.1} parent=11 // pred_region
          _
        $region20: #{tpu_custom_call.1} parent=11 // pred_fallthru
          _
        // Predicated region
        $region21: #{tpu_custom_call.1} parent=11 // pred_check
          %p171 = pneg %p103
        $region22: #{tpu_custom_call.1} parent=11 // pred_check_branch
          %173 = sbr.rel (%p171) target = $region24
        $region23: #{tpu_custom_call.1} parent=11 // pred_region
          _
        $region24: #{tpu_custom_call.1} parent=11 // pred_fallthru
          _
        // Predicated region
        $region25: #{tpu_custom_call.1} parent=11 // pred_check
          %p174 = pneg %p124
        $region26: #{tpu_custom_call.1} parent=11 // pred_check_branch
          %176 = sbr.rel (%p174) target = $region28
        $region27: #{tpu_custom_call.1} parent=11 // pred_region
          _
        $region28: #{tpu_custom_call.1} parent=11 // pred_fallthru
          _
      $region12: #{tpu_custom_call.1} parent=5 // pred_fallthru
        _
      %p177 = scmp.lt.s32.totalorder %s14, 2
      // Predicated region
      $region29: #{tpu_custom_call.1} parent=5 // pred_check
        %p178 = pneg %p177
      $region30: #{tpu_custom_call.1} parent=5 // pred_check_branch
        %180 = sbr.rel (%p178) target = $region32
      $region31: #{tpu_custom_call.1} parent=5 // pred_region
        // Predicated region
        $region33: #{tpu_custom_call.1} parent=31 // pred_check
          %p181 = pneg %p34
        $region34: #{tpu_custom_call.1} parent=31 // pred_check_branch
          %183 = sbr.rel (%p181) target = $region36
        $region35: #{tpu_custom_call.1} parent=31 // pred_region
          %p184 = scmp.lt.s32.totalorder %s14, 1
          %s185 = scalar_select %p184, %s14, 1
          %s186 = smul.addr %s185, 2
          %s187 = smul.addr %s186, 4
          %s188 = scalar_lea.vmem %s0, %s187
        $region36: #{tpu_custom_call.1} parent=31 // pred_fallthru
          _
      $region32: #{tpu_custom_call.1} parent=5 // pred_fallthru
        _
      %p189 = scmp.le.s32.totalorder 1, %s14
      %p190 = scmp.lt.s32.totalorder %s14, 3
      %p191 = pnand %p189, %p190
      %p192 = pneg %p191
      // Predicated region
      $region37: #{tpu_custom_call.1} parent=5 // pred_check
        _
      $region38: #{tpu_custom_call.1} parent=5 // pred_check_branch
        %194 = sbr.rel (%p191) target = $region40
      $region39: #{tpu_custom_call.1} parent=5 // pred_region
        %s195 = ssub.s32 %s14, 1
        %p196 = scmp.lt.s32.totalorder %s19, 1
        %s197 = scalar_select %p196, %s19, 1
        %s198 = smul.addr %s197, 2
        %s199 = smul.addr %s198, 4
        %s200 = scalar_lea.vmem %s0, %s199
        %p201 = pneg %p40
        %p202 = pneg %p37
        %p203 = pneg %p61
        %p204 = pneg %p58
        %p205 = pneg %p82
        %p206 = pneg %p79
        %p207 = pneg %p103
        %p208 = pneg %p100
        %p209 = pneg %p124
        %p210 = pneg %p121
        %p211 = pneg %p150
        %p212 = pneg %p147
        %s213 = sand.u32 %s137, 1
        %s214 = scalar_lea.sflag [#allocation4], %s213
        %s215 = sand.u32 %s137, 1
        %s216 = smul.addr %s215, 16
        %s217 = scalar_lea.vmem [#allocation3], %s216
        %p218 = scmp.lt.s32.totalorder %s19, 1
        %s219 = scalar_select %p218, %s19, 1
        %s220 = smul.addr %s219, 2
        %s221 = smul.addr %s220, 4
        %s222 = scalar_lea.vmem %s0, %s221
        %v223 = vld [vmem:[%s222] sm:$0xff]
        %v224 = vld [vmem:[%s1] sm:$0xff]
        %v225 = vld [vmem:[%s1 + $0x8] sm:$0xff]
        %v226 = vld [vmem:[%s1 + $0x10] sm:$0xff]
        %v227 = vld [vmem:[%s2] sm:$0xff]
        %v228 = vld [vmem:[%s2 + $0x8] sm:$0xff]
        %v229 = vld [vmem:[%s2 + $0x10] sm:$0xff]
        %231 = vset.pattern.permute.xlu0 0
        %232 = vperm.xlu0 %231, %v227
        %v233 = vpop.permute.xlu0 %232
        %236 = vset.pattern.permute.xlu0 0
        %237 = vperm.xlu0 %236, %v228
        %v238 = vpop.permute.xlu0 %237
        %241 = vset.pattern.permute.xlu0 0
        %242 = vperm.xlu0 %241, %v229
        %v243 = vpop.permute.xlu0 %242
        %v246 = vcombine.high %v223, %v223
        %vm247 = vcmask 31744
        %v249 = vsel %vm247, %v224, 0
        %v252 = vsel %vm247, %v225, 0
        %v255 = vsel %vm247, %v226, 0
        %vm257 = vcmask 1043456
        %v258 = vsel %vm257, %v223, 0
        %v260 = vsel %vm257, %v246, 0
        %262 = vmatprep.subr.mxu0 %v260
        %263 = vmatpush1.msra.mxu0 %v258
        %264 = vmatprep.subr.mxu0 0.0
        %265 = vmatpush1.msra.mxu0 0.0
        %266 = vmatprep.subr.mxu0 0.0
        %267 = vmatpush1.msra.mxu0 0.0
        %268 = vmatprep.subr.mxu0 0.0
        %269 = vmatpush1.msra.mxu0 0.0
        %270 = vmatprep.subr.mxu0 0.0
        %271 = vmatpush1.msra.mxu0 0.0
        %272 = vmatprep.subr.mxu0 0.0
        %273 = vmatpush1.msra.mxu0 0.0
        %274 = vmatprep.subr.mxu0 0.0
        %275 = vmatpush1.msra.mxu0 0.0
        %276 = vmatprep.subr.mxu0 0.0
        %277 = vmatpush1.msra.mxu0 0.0
        %278 = vmatprep.subr.mxu0 0.0
        %279 = vmatpush1.msra.mxu0 0.0
        %280 = vmatprep.subr.mxu0 0.0
        %281 = vmatpush1.msra.mxu0 0.0
        %282 = vmatprep.subr.mxu0 0.0
        %283 = vmatpush1.msra.mxu0 0.0
        %284 = vmatprep.subr.mxu0 0.0
        %285 = vmatpush1.msra.mxu0 0.0
        %286 = vmatprep.subr.mxu0 0.0
        %287 = vmatpush1.msra.mxu0 0.0
        %288 = vmatprep.subr.mxu0 0.0
        %289 = vmatpush1.msra.mxu0 0.0
        %290 = vmatprep.subr.mxu0 0.0
        %291 = vmatpush1.msra.mxu0 0.0
        %292 = vmatprep.subr.mxu0 0.0
        %293 = vmatpush1.msra.mxu0 0.0
        %294 = vmatprep.subr.mxu0 0.0
        %295 = vmatpush1.msra.mxu0 0.0
        %296 = vmatprep.subr.mxu0 0.0
        %297 = vmatpush1.msra.mxu0 0.0
        %298 = vmatprep.subr.mxu0 0.0
        %299 = vmatpush1.msra.mxu0 0.0
        %300 = vmatprep.subr.mxu0 0.0
        %301 = vmatpush1.msra.mxu0 0.0
        %302 = vmatprep.subr.mxu0 0.0
        %303 = vmatpush1.msra.mxu0 0.0
        %304 = vmatprep.subr.mxu0 0.0
        %305 = vmatpush1.msra.mxu0 0.0
        %306 = vmatprep.subr.mxu0 0.0
        %307 = vmatpush1.msra.mxu0 0.0
        %308 = vmatprep.subr.mxu0 0.0
        %309 = vmatpush1.msra.mxu0 0.0
        %310 = vmatprep.subr.mxu0 0.0
        %311 = vmatpush1.msra.mxu0 0.0
        %312 = vmatprep.subr.mxu0 0.0
        %313 = vmatpush1.msra.mxu0 0.0
        %314 = vmatprep.subr.mxu0 0.0
        %315 = vmatpush1.msra.mxu0 0.0
        %316 = vmatprep.subr.mxu0 0.0
        %317 = vmatpush1.msra.mxu0 0.0
        %318 = vmatprep.subr.mxu0 0.0
        %319 = vmatpush1.msra.mxu0 0.0
        %320 = vmatprep.subr.mxu0 0.0
        %321 = vmatpush1.msra.mxu0 0.0
        %322 = vmatprep.subr.mxu0 0.0
        %323 = vmatpush1.msra.mxu0 0.0
        %324 = vmatprep.subr.mxu0 0.0
        %325 = vmatpush1.msra.mxu0 0.0
        %326 = vmatprep.mubr.f32.mxu0 0.0
        %327 = vmatmul.mubr.f32.gmra.mrb[0].mxu0 %v249
        %v328 = vpop.f32.mrb[0].mxu0
        %v329 = vadd.f32 %v233, %v328
        %v330 = vpop.f32.mrb[0].mxu0
        %v331 = vadd.f32 %v233, %v330
        %332 = vmatprep.mubr.f32.mxu0 0.0
        %333 = vmatmul.mubr.f32.gmra.mrb[0].mxu0 %v252
        %v334 = vpop.f32.mrb[0].mxu0
        %v335 = vadd.f32 %v238, %v334
        %v336 = vpop.f32.mrb[0].mxu0
        %v337 = vadd.f32 %v238, %v336
        %338 = vmatprep.mubr.f32.mxu0 0.0
        %339 = vmatmul.mubr.f32.gmra.mrb[0].mxu0 %v255
        %v340 = vpop.f32.mrb[0].mxu0
        %v341 = vadd.f32 %v243, %v340
        %v342 = vpop.f32.mrb[0].mxu0
        %v343 = vadd.f32 %v243, %v342
        %344 = vdwg.mxu0
        %345 = vxpose.xlu0.b32.start [1/16] %v329, 128
        %346 = vxpose.xlu0.b32.cont [2/16] 0.0, 128
        %347 = vxpose.xlu0.b32.cont [3/16] 0.0, 128
        %348 = vxpose.xlu0.b32.cont [4/16] 0.0, 128
        %349 = vxpose.xlu0.b32.cont [5/16] 0.0, 128
        %350 = vxpose.xlu0.b32.cont [6/16] 0.0, 128
        %351 = vxpose.xlu0.b32.cont [7/16] 0.0, 128
        %352 = vxpose.xlu0.b32.cont [8/16] 0.0, 128
        %353 = vxpose.xlu0.b32.cont [9/16] 0.0, 128
        %354 = vxpose.xlu0.b32.cont [10/16] 0.0, 128
        %355 = vxpose.xlu0.b32.cont [11/16] 0.0, 128
        %356 = vxpose.xlu0.b32.cont [12/16] 0.0, 128
        %357 = vxpose.xlu0.b32.cont [13/16] 0.0, 128
        %358 = vxpose.xlu0.b32.cont [14/16] 0.0, 128
        %359 = vxpose.xlu0.b32.cont [15/16] 0.0, 128
        %360 = vxpose.xlu0.b32.end [16/16] 0.0, 128
        %v361 = vpop.trf.xlu0
        %v362 = vpop.trf.xlu0
        %v363 = vpop.trf.xlu0
        %v364 = vpop.trf.xlu0
        %v365 = vpop.trf.xlu0
        %v366 = vpop.trf.xlu0
        %v367 = vpop.trf.xlu0
        %v368 = vpop.trf.xlu0
        %v369 = vpop.trf.xlu0
        %v370 = vpop.trf.xlu0
        %v371 = vpop.trf.xlu0
        %v372 = vpop.trf.xlu0
        %v373 = vpop.trf.xlu0
        %v374 = vpop.trf.xlu0
        %v375 = vpop.trf.xlu0
        %v376 = vpop.trf.xlu0
        %377 = vxpose.xlu0.b32.start [1/16] %v331, 128
        %378 = vxpose.xlu0.b32.cont [2/16] 0.0, 128
        %379 = vxpose.xlu0.b32.cont [3/16] 0.0, 128
        %380 = vxpose.xlu0.b32.cont [4/16] 0.0, 128
        %381 = vxpose.xlu0.b32.cont [5/16] 0.0, 128
        %382 = vxpose.xlu0.b32.cont [6/16] 0.0, 128
        %383 = vxpose.xlu0.b32.cont [7/16] 0.0, 128
        %384 = vxpose.xlu0.b32.cont [8/16] 0.0, 128
        %385 = vxpose.xlu0.b32.cont [9/16] 0.0, 128
        %386 = vxpose.xlu0.b32.cont [10/16] 0.0, 128
        %387 = vxpose.xlu0.b32.cont [11/16] 0.0, 128
        %388 = vxpose.xlu0.b32.cont [12/16] 0.0, 128
        %389 = vxpose.xlu0.b32.cont [13/16] 0.0, 128
        %390 = vxpose.xlu0.b32.cont [14/16] 0.0, 128
        %391 = vxpose.xlu0.b32.cont [15/16] 0.0, 128
        %392 = vxpose.xlu0.b32.end [16/16] 0.0, 128
        %v393 = vpop.trf.xlu0
        %v394 = vpop.trf.xlu0
        %v395 = vpop.trf.xlu0
        %v396 = vpop.trf.xlu0
        %v397 = vpop.trf.xlu0
        %v398 = vpop.trf.xlu0
        %v399 = vpop.trf.xlu0
        %v400 = vpop.trf.xlu0
        %v401 = vpop.trf.xlu0
        %v402 = vpop.trf.xlu0
        %v403 = vpop.trf.xlu0
        %v404 = vpop.trf.xlu0
        %v405 = vpop.trf.xlu0
        %v406 = vpop.trf.xlu0
        %v407 = vpop.trf.xlu0
        %v408 = vpop.trf.xlu0
        %v409 = vlaneseq
        %v410 = vshrl.u32 %v409, 7
        %v411 = vadd.s32 %v410, 8
        %v412 = vadd.s32 %v410, 16
        %v413 = vadd.s32 %v410, 24
        %v414 = vadd.s32 %v410, 32
        %v415 = vadd.s32 %v410, 40
        %v416 = vadd.s32 %v410, 48
        %v417 = vadd.s32 %v410, 56
        %v418 = vadd.s32 %v410, 64
        %v419 = vadd.s32 %v410, 72
        %v420 = vadd.s32 %v410, 80
        %v421 = vadd.s32 %v410, 88
        %v422 = vadd.s32 %v410, 96
        %v423 = vadd.s32 %v410, 104
        %v424 = vadd.s32 %v410, 112
        %v425 = vadd.s32 %v410, 120
        %v426 = vadd.s32 %v410, 128
        %v427 = vadd.s32 %v410, 136
        %v428 = vadd.s32 %v410, 144
        %v429 = vadd.s32 %v410, 152
        %v430 = vadd.s32 %v410, 160
        %v431 = vadd.s32 %v410, 168
        %v432 = vadd.s32 %v410, 176
        %v433 = vadd.s32 %v410, 184
        %v434 = vadd.s32 %v410, 192
        %v435 = vadd.s32 %v410, 200
        %v436 = vadd.s32 %v410, 208
        %v437 = vadd.s32 %v410, 216
        %v438 = vadd.s32 %v410, 224
        %v439 = vadd.s32 %v410, 232
        %v440 = vadd.s32 %v410, 240
        %v441 = vadd.s32 %v410, 248
        %v442 = vlaneseq
        %v443 = vand.u32 %v442, 127
        %v444 = vadd.s32 %v443, 128
        %v445 = vsub.s32 %v410, %v443
        %v446 = vsub.s32 %v410, %v444
        %v447 = vsub.s32 %v411, %v443
        %v448 = vsub.s32 %v411, %v444
        %v449 = vsub.s32 %v412, %v443
        %v450 = vsub.s32 %v412, %v444
        %v451 = vsub.s32 %v413, %v443
        %v452 = vsub.s32 %v413, %v444
        %v453 = vsub.s32 %v414, %v443
        %v454 = vsub.s32 %v414, %v444
        %v455 = vsub.s32 %v415, %v443
        %v456 = vsub.s32 %v415, %v444
        %v457 = vsub.s32 %v416, %v443
        %v458 = vsub.s32 %v416, %v444
        %v459 = vsub.s32 %v417, %v443
        %v460 = vsub.s32 %v417, %v444
        %v461 = vsub.s32 %v418, %v443
        %v462 = vsub.s32 %v418, %v444
        %v463 = vsub.s32 %v419, %v443
        %v464 = vsub.s32 %v419, %v444
        %v465 = vsub.s32 %v420, %v443
        %v466 = vsub.s32 %v420, %v444
        %v467 = vsub.s32 %v421, %v443
        %v468 = vsub.s32 %v421, %v444
        %v469 = vsub.s32 %v422, %v443
        %v470 = vsub.s32 %v422, %v444
        %v471 = vsub.s32 %v423, %v443
        %v472 = vsub.s32 %v423, %v444
        %v473 = vsub.s32 %v424, %v443
        %v474 = vsub.s32 %v424, %v444
        %v475 = vsub.s32 %v425, %v443
        %v476 = vsub.s32 %v425, %v444
        %v477 = vsub.s32 %v426, %v443
        %v478 = vsub.s32 %v426, %v444
        %v479 = vsub.s32 %v427, %v443
        %v480 = vsub.s32 %v427, %v444
        %v481 = vsub.s32 %v428, %v443
        %v482 = vsub.s32 %v428, %v444
        %v483 = vsub.s32 %v429, %v443
        %v484 = vsub.s32 %v429, %v444
        %v485 = vsub.s32 %v430, %v443
        %v486 = vsub.s32 %v430, %v444
        %v487 = vsub.s32 %v431, %v443
        %v488 = vsub.s32 %v431, %v444
        %v489 = vsub.s32 %v432, %v443
        %v490 = vsub.s32 %v432, %v444
        %v491 = vsub.s32 %v433, %v443
        %v492 = vsub.s32 %v433, %v444
        %v493 = vsub.s32 %v434, %v443
        %v494 = vsub.s32 %v434, %v444
        %v495 = vsub.s32 %v435, %v443
        %v496 = vsub.s32 %v435, %v444
        %v497 = vsub.s32 %v436, %v443
        %v498 = vsub.s32 %v436, %v444
        %v499 = vsub.s32 %v437, %v443
        %v500 = vsub.s32 %v437, %v444
        %v501 = vsub.s32 %v438, %v443
        %v502 = vsub.s32 %v438, %v444
        %v503 = vsub.s32 %v439, %v443
        %v504 = vsub.s32 %v439, %v444
        %v505 = vsub.s32 %v440, %v443
        %v506 = vsub.s32 %v440, %v444
        %v507 = vsub.s32 %v441, %v443
        %v508 = vsub.s32 %v441, %v444
        %vm509 = vcmp.ge.s32.totalorder %v445, 0
        %vm510 = vcmp.ge.s32.totalorder %v446, 0
        %vm511 = vcmp.ge.s32.totalorder %v447, 0
        %vm512 = vcmp.ge.s32.totalorder %v448, 0
        %vm513 = vcmp.ge.s32.totalorder %v449, 0
        %vm514 = vcmp.ge.s32.totalorder %v450, 0
        %vm515 = vcmp.ge.s32.totalorder %v451, 0
        %vm516 = vcmp.ge.s32.totalorder %v452, 0
        %vm517 = vcmp.ge.s32.totalorder %v453, 0
        %vm518 = vcmp.ge.s32.totalorder %v454, 0
        %vm519 = vcmp.ge.s32.totalorder %v455, 0
        %vm520 = vcmp.ge.s32.totalorder %v456, 0
        %vm521 = vcmp.ge.s32.totalorder %v457, 0
        %vm522 = vcmp.ge.s32.totalorder %v458, 0
        %vm523 = vcmp.ge.s32.totalorder %v459, 0
        %vm524 = vcmp.ge.s32.totalorder %v460, 0
        %vm525 = vcmp.ge.s32.totalorder %v461, 0
        %vm526 = vcmp.ge.s32.totalorder %v462, 0
        %vm527 = vcmp.ge.s32.totalorder %v463, 0
        %vm528 = vcmp.ge.s32.totalorder %v464, 0
        %vm529 = vcmp.ge.s32.totalorder %v465, 0
        %vm530 = vcmp.ge.s32.totalorder %v466, 0
        %vm531 = vcmp.ge.s32.totalorder %v467, 0
        %vm532 = vcmp.ge.s32.totalorder %v468, 0
        %vm533 = vcmp.ge.s32.totalorder %v469, 0
        %vm534 = vcmp.ge.s32.totalorder %v470, 0
        %vm535 = vcmp.ge.s32.totalorder %v471, 0
        %vm536 = vcmp.ge.s32.totalorder %v472, 0
        %vm537 = vcmp.ge.s32.totalorder %v473, 0
        %vm538 = vcmp.ge.s32.totalorder %v474, 0
        %vm539 = vcmp.ge.s32.totalorder %v475, 0
        %vm540 = vcmp.ge.s32.totalorder %v476, 0
        %vm541 = vcmp.ge.s32.totalorder %v477, 0
        %vm542 = vcmp.ge.s32.totalorder %v478, 0
        %vm543 = vcmp.ge.s32.totalorder %v479, 0
        %vm544 = vcmp.ge.s32.totalorder %v480, 0
        %vm545 = vcmp.ge.s32.totalorder %v481, 0
        %vm546 = vcmp.ge.s32.totalorder %v482, 0
        %vm547 = vcmp.ge.s32.totalorder %v483, 0
        %vm548 = vcmp.ge.s32.totalorder %v484, 0
        %vm549 = vcmp.ge.s32.totalorder %v485, 0
        %vm550 = vcmp.ge.s32.totalorder %v486, 0
        %vm551 = vcmp.ge.s32.totalorder %v487, 0
        %vm552 = vcmp.ge.s32.totalorder %v488, 0
        %vm553 = vcmp.ge.s32.totalorder %v489, 0
        %vm554 = vcmp.ge.s32.totalorder %v490, 0
        %vm555 = vcmp.ge.s32.totalorder %v491, 0
        %vm556 = vcmp.ge.s32.totalorder %v492, 0
        %vm557 = vcmp.ge.s32.totalorder %v493, 0
        %vm558 = vcmp.ge.s32.totalorder %v494, 0
        %vm559 = vcmp.ge.s32.totalorder %v495, 0
        %vm560 = vcmp.ge.s32.totalorder %v496, 0
        %vm561 = vcmp.ge.s32.totalorder %v497, 0
        %vm562 = vcmp.ge.s32.totalorder %v498, 0
        %vm563 = vcmp.ge.s32.totalorder %v499, 0
        %vm564 = vcmp.ge.s32.totalorder %v500, 0
        %vm565 = vcmp.ge.s32.totalorder %v501, 0
        %vm566 = vcmp.ge.s32.totalorder %v502, 0
        %vm567 = vcmp.ge.s32.totalorder %v503, 0
        %vm568 = vcmp.ge.s32.totalorder %v504, 0
        %vm569 = vcmp.ge.s32.totalorder %v505, 0
        %vm570 = vcmp.ge.s32.totalorder %v506, 0
        %vm571 = vcmp.ge.s32.totalorder %v507, 0
        %vm572 = vcmp.ge.s32.totalorder %v508, 0
        %v573 = vsel %vm509, 0.0, -1e+30
        %v574 = vsel %vm510, 0.0, -1e+30
        %v575 = vsel %vm511, 0.0, -1e+30
        %v576 = vsel %vm512, 0.0, -1e+30
        %v577 = vsel %vm513, 0.0, -1e+30
        %v578 = vsel %vm514, 0.0, -1e+30
        %v579 = vsel %vm515, 0.0, -1e+30
        %v580 = vsel %vm516, 0.0, -1e+30
        %v581 = vsel %vm517, 0.0, -1e+30
        %v582 = vsel %vm518, 0.0, -1e+30
        %v583 = vsel %vm519, 0.0, -1e+30
        %v584 = vsel %vm520, 0.0, -1e+30
        %v585 = vsel %vm521, 0.0, -1e+30
        %v586 = vsel %vm522, 0.0, -1e+30
        %v587 = vsel %vm523, 0.0, -1e+30
        %v588 = vsel %vm524, 0.0, -1e+30
        %v589 = vsel %vm525, 0.0, -1e+30
        %v590 = vsel %vm526, 0.0, -1e+30
        %v591 = vsel %vm527, 0.0, -1e+30
        %v592 = vsel %vm528, 0.0, -1e+30
        %v593 = vsel %vm529, 0.0, -1e+30
        %v594 = vsel %vm530, 0.0, -1e+30
        %v595 = vsel %vm531, 0.0, -1e+30
        %v596 = vsel %vm532, 0.0, -1e+30
        %v597 = vsel %vm533, 0.0, -1e+30
        %v598 = vsel %vm534, 0.0, -1e+30
        %v599 = vsel %vm535, 0.0, -1e+30
        %v600 = vsel %vm536, 0.0, -1e+30
        %v601 = vsel %vm537, 0.0, -1e+30
        %v602 = vsel %vm538, 0.0, -1e+30
        %v603 = vsel %vm539, 0.0, -1e+30
        %v604 = vsel %vm540, 0.0, -1e+30
        %v605 = vsel %vm541, 0.0, -1e+30
        %v606 = vsel %vm542, 0.0, -1e+30
        %v607 = vsel %vm543, 0.0, -1e+30
        %v608 = vsel %vm544, 0.0, -1e+30
        %v609 = vsel %vm545, 0.0, -1e+30
        %v610 = vsel %vm546, 0.0, -1e+30
        %v611 = vsel %vm547, 0.0, -1e+30
        %v612 = vsel %vm548, 0.0, -1e+30
        %v613 = vsel %vm549, 0.0, -1e+30
        %v614 = vsel %vm550, 0.0, -1e+30
        %v615 = vsel %vm551, 0.0, -1e+30
        %v616 = vsel %vm552, 0.0, -1e+30
        %v617 = vsel %vm553, 0.0, -1e+30
        %v618 = vsel %vm554, 0.0, -1e+30
        %v619 = vsel %vm555, 0.0, -1e+30
        %v620 = vsel %vm556, 0.0, -1e+30
        %v621 = vsel %vm557, 0.0, -1e+30
        %v622 = vsel %vm558, 0.0, -1e+30
        %v623 = vsel %vm559, 0.0, -1e+30
        %v624 = vsel %vm560, 0.0, -1e+30
        %v625 = vsel %vm561, 0.0, -1e+30
        %v626 = vsel %vm562, 0.0, -1e+30
        %v627 = vsel %vm563, 0.0, -1e+30
        %v628 = vsel %vm564, 0.0, -1e+30
        %v629 = vsel %vm565, 0.0, -1e+30
        %v630 = vsel %vm566, 0.0, -1e+30
        %v631 = vsel %vm567, 0.0, -1e+30
        %v632 = vsel %vm568, 0.0, -1e+30
        %v633 = vsel %vm569, 0.0, -1e+30
        %v634 = vsel %vm570, 0.0, -1e+30
        %v635 = vsel %vm571, 0.0, -1e+30
        %v636 = vsel %vm572, 0.0, -1e+30
        %v638 = vsel %vm247, %v361, 0
        %v641 = vsel %vm247, %v362, 0
        %v644 = vsel %vm247, %v363, 0
        %v647 = vsel %vm247, %v364, 0
        %v650 = vsel %vm247, %v365, 0
        %v653 = vsel %vm247, %v366, 0
        %v656 = vsel %vm247, %v367, 0
        %v659 = vsel %vm247, %v368, 0
        %v662 = vsel %vm247, %v369, 0
        %v665 = vsel %vm247, %v370, 0
        %v668 = vsel %vm247, %v371, 0
        %v671 = vsel %vm247, %v372, 0
        %v674 = vsel %vm247, %v373, 0
        %v677 = vsel %vm247, %v374, 0
        %v680 = vsel %vm247, %v375, 0
        %v683 = vsel %vm247, %v376, 0
        %v686 = vsel %vm247, %v393, 0
        %v689 = vsel %vm247, %v394, 0
        %v692 = vsel %vm247, %v395, 0
        %v695 = vsel %vm247, %v396, 0
        %v698 = vsel %vm247, %v397, 0
        %v701 = vsel %vm247, %v398, 0
        %v704 = vsel %vm247, %v399, 0
        %v707 = vsel %vm247, %v400, 0
        %v710 = vsel %vm247, %v401, 0
        %v713 = vsel %vm247, %v402, 0
        %v716 = vsel %vm247, %v403, 0
        %v719 = vsel %vm247, %v404, 0
        %v722 = vsel %vm247, %v405, 0
        %v725 = vsel %vm247, %v406, 0
        %v728 = vsel %vm247, %v407, 0
        %v731 = vsel %vm247, %v408, 0
        %v734 = vsel %vm257, %v335, 0
        %v737 = vsel %vm257, %v337, 0
        %739 = vmatprep.subr.mxu0 %v737
        %740 = vmatpush1.msra.mxu0 %v734
        %741 = vmatprep.subr.mxu0 0.0
        %742 = vmatpush1.msra.mxu0 0.0
        %743 = vmatprep.subr.mxu0 0.0
        %744 = vmatpush1.msra.mxu0 0.0
        %745 = vmatprep.subr.mxu0 0.0
        %746 = vmatpush1.msra.mxu0 0.0
        %747 = vmatprep.subr.mxu0 0.0
        %748 = vmatpush1.msra.mxu0 0.0
        %749 = vmatprep.subr.mxu0 0.0
        %750 = vmatpush1.msra.mxu0 0.0
        %751 = vmatprep.subr.mxu0 0.0
        %752 = vmatpush1.msra.mxu0 0.0
        %753 = vmatprep.subr.mxu0 0.0
        %754 = vmatpush1.msra.mxu0 0.0
        %755 = vmatprep.subr.mxu0 0.0
        %756 = vmatpush1.msra.mxu0 0.0
        %757 = vmatprep.subr.mxu0 0.0
        %758 = vmatpush1.msra.mxu0 0.0
        %759 = vmatprep.subr.mxu0 0.0
        %760 = vmatpush1.msra.mxu0 0.0
        %761 = vmatprep.subr.mxu0 0.0
        %762 = vmatpush1.msra.mxu0 0.0
        %763 = vmatprep.subr.mxu0 0.0
        %764 = vmatpush1.msra.mxu0 0.0
        %765 = vmatprep.subr.mxu0 0.0
        %766 = vmatpush1.msra.mxu0 0.0
        %767 = vmatprep.subr.mxu0 0.0
        %768 = vmatpush1.msra.mxu0 0.0
        %769 = vmatprep.subr.mxu0 0.0
        %770 = vmatpush1.msra.mxu0 0.0
        %771 = vmatprep.subr.mxu0 0.0
        %772 = vmatpush1.msra.mxu0 0.0
        %773 = vmatprep.subr.mxu0 0.0
        %774 = vmatpush1.msra.mxu0 0.0
        %775 = vmatprep.subr.mxu0 0.0
        %776 = vmatpush1.msra.mxu0 0.0
        %777 = vmatprep.subr.mxu0 0.0
        %778 = vmatpush1.msra.mxu0 0.0
        %779 = vmatprep.subr.mxu0 0.0
        %780 = vmatpush1.msra.mxu0 0.0
        %781 = vmatprep.subr.mxu0 0.0
        %782 = vmatpush1.msra.mxu0 0.0
        %783 = vmatprep.subr.mxu0 0.0
        %784 = vmatpush1.msra.mxu0 0.0
        %785 = vmatprep.subr.mxu0 0.0
        %786 = vmatpush1.msra.mxu0 0.0
        %787 = vmatprep.subr.mxu0 0.0
        %788 = vmatpush1.msra.mxu0 0.0
        %789 = vmatprep.subr.mxu0 0.0
        %790 = vmatpush1.msra.mxu0 0.0
        %791 = vmatprep.subr.mxu0 0.0
        %792 = vmatpush1.msra.mxu0 0.0
        %793 = vmatprep.subr.mxu0 0.0
        %794 = vmatpush1.msra.mxu0 0.0
        %795 = vmatprep.subr.mxu0 0.0
        %796 = vmatpush1.msra.mxu0 0.0
        %797 = vmatprep.subr.mxu0 0.0
        %798 = vmatpush1.msra.mxu0 0.0
        %799 = vmatprep.subr.mxu0 0.0
        %800 = vmatpush1.msra.mxu0 0.0
        %801 = vmatprep.subr.mxu0 0.0
        %802 = vmatpush1.msra.mxu0 0.0
        %803 = vmatprep.mubr.f32.mxu0 0.0
        %804 = vmatmul.mubr.f32.gmra.mrb[0].mxu0 %v638
        %v805 = vpop.f32.mrb[0].mxu0
        %v806 = vadd.f32 0.0, %v805
        %v807 = vpop.f32.mrb[0].mxu0
        %v808 = vadd.f32 0.0, %v807
        %809 = vmatprep.mubr.f32.mxu0 0.0
        %810 = vmatmul.mubr.f32.gmra.mrb[0].mxu0 %v641
        %v811 = vpop.f32.mrb[0].mxu0
        %v812 = vadd.f32 0.0, %v811
        %v813 = vpop.f32.mrb[0].mxu0
        %v814 = vadd.f32 0.0, %v813
        %815 = vmatprep.mubr.f32.mxu0 0.0
        %816 = vmatmul.mubr.f32.gmra.mrb[0].mxu0 %v644
        %v817 = vpop.f32.mrb[0].mxu0
        %v818 = vadd.f32 0.0, %v817
        %v819 = vpop.f32.mrb[0].mxu0
        %v820 = vadd.f32 0.0, %v819
        %821 = vmatprep.mubr.f32.mxu0 0.0
        %822 = vmatmul.mubr.f32.gmra.mrb[0].mxu0 %v647
        %v823 = vpop.f32.mrb[0].mxu0
        %v824 = vadd.f32 0.0, %v823
        %v825 = vpop.f32.mrb[0].mxu0
        %v826 = vadd.f32 0.0, %v825
        %827 = vmatprep.mubr.f32.mxu0 0.0
        %828 = vmatmul.mubr.f32.gmra.mrb[0].mxu0 %v650
        %v829 = vpop.f32.mrb[0].mxu0
        %v830 = vadd.f32 0.0, %v829
        %v831 = vpop.f32.mrb[0].mxu0
        %v832 = vadd.f32 0.0, %v831
        %833 = vmatprep.mubr.f32.mxu0 0.0
        %834 = vmatmul.mubr.f32.gmra.mrb[0].mxu0 %v653
        %v835 = vpop.f32.mrb[0].mxu0
        %v836 = vadd.f32 0.0, %v835
        %v837 = vpop.f32.mrb[0].mxu0
        %v838 = vadd.f32 0.0, %v837
        %839 = vmatprep.mubr.f32.mxu0 0.0
        %840 = vmatmul.mubr.f32.gmra.mrb[0].mxu0 %v656
        %v841 = vpop.f32.mrb[0].mxu0
        %v842 = vadd.f32 0.0, %v841
        %v843 = vpop.f32.mrb[0].mxu0
        %v844 = vadd.f32 0.0, %v843
        %845 = vmatprep.mubr.f32.mxu0 0.0
        %846 = vmatmul.mubr.f32.gmra.mrb[0].mxu0 %v659
        %v847 = vpop.f32.mrb[0].mxu0
        %v848 = vadd.f32 0.0, %v847
        %v849 = vpop.f32.mrb[0].mxu0
        %v850 = vadd.f32 0.0, %v849
        %851 = vmatprep.mubr.f32.mxu0 0.0
        %852 = vmatmul.mubr.f32.gmra.mrb[0].mxu0 %v662
        %v853 = vpop.f32.mrb[0].mxu0
        %v854 = vadd.f32 0.0, %v853
        %v855 = vpop.f32.mrb[0].mxu0
        %v856 = vadd.f32 0.0, %v855
        %857 = vmatprep.mubr.f32.mxu0 0.0
        %858 = vmatmul.mubr.f32.gmra.mrb[0].mxu0 %v665
        %v859 = vpop.f32.mrb[0].mxu0
        %v860 = vadd.f32 0.0, %v859
        %v861 = vpop.f32.mrb[0].mxu0
        %v862 = vadd.f32 0.0, %v861
        %863 = vmatprep.mubr.f32.mxu0 0.0
        %864 = vmatmul.mubr.f32.gmra.mrb[0].mxu0 %v668
        %v865 = vpop.f32.mrb[0].mxu0
        %v866 = vadd.f32 0.0, %v865
        %v867 = vpop.f32.mrb[0].mxu0
        %v868 = vadd.f32 0.0, %v867
        %869 = vmatprep.mubr.f32.mxu0 0.0
        %870 = vmatmul.mubr.f32.gmra.mrb[0].mxu0 %v671
        %v871 = vpop.f32.mrb[0].mxu0
        %v872 = vadd.f32 0.0, %v871
        %v873 = vpop.f32.mrb[0].mxu0
        %v874 = vadd.f32 0.0, %v873
        %875 = vmatprep.mubr.f32.mxu0 0.0
        %876 = vmatmul.mubr.f32.gmra.mrb[0].mxu0 %v674
        %v877 = vpop.f32.mrb[0].mxu0
        %v878 = vadd.f32 0.0, %v877
        %v879 = vpop.f32.mrb[0].mxu0
        %v880 = vadd.f32 0.0, %v879
        %881 = vmatprep.mubr.f32.mxu0 0.0
        %882 = vmatmul.mubr.f32.gmra.mrb[0].mxu0 %v677
        %v883 = vpop.f32.mrb[0].mxu0
        %v884 = vadd.f32 0.0, %v883
        %v885 = vpop.f32.mrb[0].mxu0
        %v886 = vadd.f32 0.0, %v885
        %887 = vmatprep.mubr.f32.mxu0 0.0
        %888 = vmatmul.mubr.f32.gmra.mrb[0].mxu0 %v680
        %v889 = vpop.f32.mrb[0].mxu0
        %v890 = vadd.f32 0.0, %v889
        %v891 = vpop.f32.mrb[0].mxu0
        %v892 = vadd.f32 0.0, %v891
        %893 = vmatprep.mubr.f32.mxu0 0.0
        %894 = vmatmul.mubr.f32.gmra.mrb[0].mxu0 %v683
        %v895 = vpop.f32.mrb[0].mxu0
        %v896 = vadd.f32 0.0, %v895
        %v897 = vpop.f32.mrb[0].mxu0
        %v898 = vadd.f32 0.0, %v897
        %899 = vmatprep.mubr.f32.mxu0 0.0
        %900 = vmatmul.mubr.f32.gmra.mrb[0].mxu0 %v686
        %v901 = vpop.f32.mrb[0].mxu0
        %v902 = vadd.f32 0.0, %v901
        %v903 = vpop.f32.mrb[0].mxu0
        %v904 = vadd.f32 0.0, %v903
        %905 = vmatprep.mubr.f32.mxu0 0.0
        %906 = vmatmul.mubr.f32.gmra.mrb[0].mxu0 %v689
        %v907 = vpop.f32.mrb[0].mxu0
        %v908 = vadd.f32 0.0, %v907
        %v909 = vpop.f32.mrb[0].mxu0
        %v910 = vadd.f32 0.0, %v909
        %911 = vmatprep.mubr.f32.mxu0 0.0
        %912 = vmatmul.mubr.f32.gmra.mrb[0].mxu0 %v692
        %v913 = vpop.f32.mrb[0].mxu0
        %v914 = vadd.f32 0.0, %v913
        %v915 = vpop.f32.mrb[0].mxu0
        %v916 = vadd.f32 0.0, %v915
        %917 = vmatprep.mubr.f32.mxu0 0.0
        %918 = vmatmul.mubr.f32.gmra.mrb[0].mxu0 %v695
        %v919 = vpop.f32.mrb[0].mxu0
        %v920 = vadd.f32 0.0, %v919
        %v921 = vpop.f32.mrb[0].mxu0
        %v922 = vadd.f32 0.0, %v921
        %923 = vmatprep.mubr.f32.mxu0 0.0
        %924 = vmatmul.mubr.f32.gmra.mrb[0].mxu0 %v698
        %v925 = vpop.f32.mrb[0].mxu0
        %v926 = vadd.f32 0.0, %v925
        %v927 = vpop.f32.mrb[0].mxu0
        %v928 = vadd.f32 0.0, %v927
        %929 = vmatprep.mubr.f32.mxu0 0.0
        %930 = vmatmul.mubr.f32.gmra.mrb[0].mxu0 %v701
        %v931 = vpop.f32.mrb[0].mxu0
        %v932 = vadd.f32 0.0, %v931
        %v933 = vpop.f32.mrb[0].mxu0
        %v934 = vadd.f32 0.0, %v933
        %935 = vmatprep.mubr.f32.mxu0 0.0
        %936 = vmatmul.mubr.f32.gmra.mrb[0].mxu0 %v704
        %v937 = vpop.f32.mrb[0].mxu0
        %v938 = vadd.f32 0.0, %v937
        %v939 = vpop.f32.mrb[0].mxu0
        %v940 = vadd.f32 0.0, %v939
        %941 = vmatprep.mubr.f32.mxu0 0.0
        %942 = vmatmul.mubr.f32.gmra.mrb[0].mxu0 %v707
        %v943 = vpop.f32.mrb[0].mxu0
        %v944 = vadd.f32 0.0, %v943
        %v945 = vpop.f32.mrb[0].mxu0
        %v946 = vadd.f32 0.0, %v945
        %947 = vmatprep.mubr.f32.mxu0 0.0
        %948 = vmatmul.mubr.f32.gmra.mrb[0].mxu0 %v710
        %v949 = vpop.f32.mrb[0].mxu0
        %v950 = vadd.f32 0.0, %v949
        %v951 = vpop.f32.mrb[0].mxu0
        %v952 = vadd.f32 0.0, %v951
        %953 = vmatprep.mubr.f32.mxu0 0.0
        %954 = vmatmul.mubr.f32.gmra.mrb[0].mxu0 %v713
        %v955 = vpop.f32.mrb[0].mxu0
        %v956 = vadd.f32 0.0, %v955
        %v957 = vpop.f32.mrb[0].mxu0
        %v958 = vadd.f32 0.0, %v957
        %959 = vmatprep.mubr.f32.mxu0 0.0
        %960 = vmatmul.mubr.f32.gmra.mrb[0].mxu0 %v716
        %v961 = vpop.f32.mrb[0].mxu0
        %v962 = vadd.f32 0.0, %v961
        %v963 = vpop.f32.mrb[0].mxu0
        %v964 = vadd.f32 0.0, %v963
        %965 = vmatprep.mubr.f32.mxu0 0.0
        %966 = vmatmul.mubr.f32.gmra.mrb[0].mxu0 %v719
        %v967 = vpop.f32.mrb[0].mxu0
        %v968 = vadd.f32 0.0, %v967
        %v969 = vpop.f32.mrb[0].mxu0
        %v970 = vadd.f32 0.0, %v969
        %971 = vmatprep.mubr.f32.mxu0 0.0
        %972 = vmatmul.mubr.f32.gmra.mrb[0].mxu0 %v722
        %v973 = vpop.f32.mrb[0].mxu0
        %v974 = vadd.f32 0.0, %v973
        %v975 = vpop.f32.mrb[0].mxu0
        %v976 = vadd.f32 0.0, %v975
        %977 = vmatprep.mubr.f32.mxu0 0.0
        %978 = vmatmul.mubr.f32.gmra.mrb[0].mxu0 %v725
        %v979 = vpop.f32.mrb[0].mxu0
        %v980 = vadd.f32 0.0, %v979
        %v981 = vpop.f32.mrb[0].mxu0
        %v982 = vadd.f32 0.0, %v981
        %983 = vmatprep.mubr.f32.mxu0 0.0
        %984 = vmatmul.mubr.f32.gmra.mrb[0].mxu0 %v728
        %v985 = vpop.f32.mrb[0].mxu0
        %v986 = vadd.f32 0.0, %v985
        %v987 = vpop.f32.mrb[0].mxu0
        %v988 = vadd.f32 0.0, %v987
        %989 = vmatprep.mubr.f32.mxu0 0.0
        %990 = vmatmul.mubr.f32.gmra.mrb[0].mxu0 %v731
        %v991 = vpop.f32.mrb[0].mxu0
        %v992 = vadd.f32 0.0, %v991
        %v993 = vpop.f32.mrb[0].mxu0
        %v994 = vadd.f32 0.0, %v993
        %995 = vdwg.mxu0
        %v996 = vmul.f32 %v806, 0.5
        %v997 = vmul.f32 %v808, 0.5
        %v998 = vmul.f32 %v812, 0.5
        %v999 = vmul.f32 %v814, 0.5
        %v1000 = vmul.f32 %v818, 0.5
        %v1001 = vmul.f32 %v820, 0.5
        %v1002 = vmul.f32 %v824, 0.5
        %v1003 = vmul.f32 %v826, 0.5
        %v1004 = vmul.f32 %v830, 0.5
        %v1005 = vmul.f32 %v832, 0.5
        %v1006 = vmul.f32 %v836, 0.5
        %v1007 = vmul.f32 %v838, 0.5
        %v1008 = vmul.f32 %v842, 0.5
        %v1009 = vmul.f32 %v844, 0.5
        %v1010 = vmul.f32 %v848, 0.5
        %v1011 = vmul.f32 %v850, 0.5
        %v1012 = vmul.f32 %v854, 0.5
        %v1013 = vmul.f32 %v856, 0.5
        %v1014 = vmul.f32 %v860, 0.5
        %v1015 = vmul.f32 %v862, 0.5
        %v1016 = vmul.f32 %v866, 0.5
        %v1017 = vmul.f32 %v868, 0.5
        %v1018 = vmul.f32 %v872, 0.5
        %v1019 = vmul.f32 %v874, 0.5
        %v1020 = vmul.f32 %v878, 0.5
        %v1021 = vmul.f32 %v880, 0.5
        %v1022 = vmul.f32 %v884, 0.5
        %v1023 = vmul.f32 %v886, 0.5
        %v1024 = vmul.f32 %v890, 0.5
        %v1025 = vmul.f32 %v892, 0.5
        %v1026 = vmul.f32 %v896, 0.5
        %v1027 = vmul.f32 %v898, 0.5
        %v1028 = vmul.f32 %v902, 0.5
        %v1029 = vmul.f32 %v904, 0.5
        %v1030 = vmul.f32 %v908, 0.5
        %v1031 = vmul.f32 %v910, 0.5
        %v1032 = vmul.f32 %v914, 0.5
        %v1033 = vmul.f32 %v916, 0.5
        %v1034 = vmul.f32 %v920, 0.5
        %v1035 = vmul.f32 %v922, 0.5
        %v1036 = vmul.f32 %v926, 0.5
        %v1037 = vmul.f32 %v928, 0.5
        %v1038 = vmul.f32 %v932, 0.5
        %v1039 = vmul.f32 %v934, 0.5
        %v1040 = vmul.f32 %v938, 0.5
        %v1041 = vmul.f32 %v940, 0.5
        %v1042 = vmul.f32 %v944, 0.5
        %v1043 = vmul.f32 %v946, 0.5
        %v1044 = vmul.f32 %v950, 0.5
        %v1045 = vmul.f32 %v952, 0.5
        %v1046 = vmul.f32 %v956, 0.5
        %v1047 = vmul.f32 %v958, 0.5
        %v1048 = vmul.f32 %v962, 0.5
        %v1049 = vmul.f32 %v964, 0.5
        %v1050 = vmul.f32 %v968, 0.5
        %v1051 = vmul.f32 %v970, 0.5
        %v1052 = vmul.f32 %v974, 0.5
        %v1053 = vmul.f32 %v976, 0.5
        %v1054 = vmul.f32 %v980, 0.5
        %v1055 = vmul.f32 %v982, 0.5
        %v1056 = vmul.f32 %v986, 0.5
        %v1057 = vmul.f32 %v988, 0.5
        %v1058 = vmul.f32 %v992, 0.5
        %v1059 = vmul.f32 %v994, 0.5
        %v1060 = vadd.f32 %v996, %v573
        %v1061 = vadd.f32 %v997, %v574
        %v1062 = vadd.f32 %v998, %v575
        %v1063 = vadd.f32 %v999, %v576
        %v1064 = vadd.f32 %v1000, %v577
        %v1065 = vadd.f32 %v1001, %v578
        %v1066 = vadd.f32 %v1002, %v579
        %v1067 = vadd.f32 %v1003, %v580
        %v1068 = vadd.f32 %v1004, %v581
        %v1069 = vadd.f32 %v1005, %v582
        %v1070 = vadd.f32 %v1006, %v583
        %v1071 = vadd.f32 %v1007, %v584
        %v1072 = vadd.f32 %v1008, %v585
        %v1073 = vadd.f32 %v1009, %v586
        %v1074 = vadd.f32 %v1010, %v587
        %v1075 = vadd.f32 %v1011, %v588
        %v1076 = vadd.f32 %v1012, %v589
        %v1077 = vadd.f32 %v1013, %v590
        %v1078 = vadd.f32 %v1014, %v591
        %v1079 = vadd.f32 %v1015, %v592
        %v1080 = vadd.f32 %v1016, %v593
        %v1081 = vadd.f32 %v1017, %v594
        %v1082 = vadd.f32 %v1018, %v595
        %v1083 = vadd.f32 %v1019, %v596
        %v1084 = vadd.f32 %v1020, %v597
        %v1085 = vadd.f32 %v1021, %v598
        %v1086 = vadd.f32 %v1022, %v599
        %v1087 = vadd.f32 %v1023, %v600
        %v1088 = vadd.f32 %v1024, %v601
        %v1089 = vadd.f32 %v1025, %v602
        %v1090 = vadd.f32 %v1026, %v603
        %v1091 = vadd.f32 %v1027, %v604
        %v1092 = vadd.f32 %v1028, %v605
        %v1093 = vadd.f32 %v1029, %v606
        %v1094 = vadd.f32 %v1030, %v607
        %v1095 = vadd.f32 %v1031, %v608
        %v1096 = vadd.f32 %v1032, %v609
        %v1097 = vadd.f32 %v1033, %v610
        %v1098 = vadd.f32 %v1034, %v611
        %v1099 = vadd.f32 %v1035, %v612
        %v1100 = vadd.f32 %v1036, %v613
        %v1101 = vadd.f32 %v1037, %v614
        %v1102 = vadd.f32 %v1038, %v615
        %v1103 = vadd.f32 %v1039, %v616
        %v1104 = vadd.f32 %v1040, %v617
        %v1105 = vadd.f32 %v1041, %v618
        %v1106 = vadd.f32 %v1042, %v619
        %v1107 = vadd.f32 %v1043, %v620
        %v1108 = vadd.f32 %v1044, %v621
        %v1109 = vadd.f32 %v1045, %v622
        %v1110 = vadd.f32 %v1046, %v623
        %v1111 = vadd.f32 %v1047, %v624
        %v1112 = vadd.f32 %v1048, %v625
        %v1113 = vadd.f32 %v1049, %v626
        %v1114 = vadd.f32 %v1050, %v627
        %v1115 = vadd.f32 %v1051, %v628
        %v1116 = vadd.f32 %v1052, %v629
        %v1117 = vadd.f32 %v1053, %v630
        %v1118 = vadd.f32 %v1054, %v631
        %v1119 = vadd.f32 %v1055, %v632
        %v1120 = vadd.f32 %v1056, %v633
        %v1121 = vadd.f32 %v1057, %v634
        %v1122 = vadd.f32 %v1058, %v635
        %v1123 = vadd.f32 %v1059, %v636
        %v1124 = vmax.f32 %v1060, %v1061
        %1125 = vmax.xlane.f32.xlu0 %v1124
        %v1126 = vpop.xlane.xlu0 %1125
        %v1127 = vmax.f32 %v1062, %v1063
        %1128 = vmax.xlane.f32.xlu0 %v1127
        %v1129 = vpop.xlane.xlu0 %1128
        %v1130 = vmax.f32 %v1064, %v1065
        %1131 = vmax.xlane.f32.xlu0 %v1130
        %v1132 = vpop.xlane.xlu0 %1131
        %v1133 = vmax.f32 %v1066, %v1067
        %1134 = vmax.xlane.f32.xlu0 %v1133
        %v1135 = vpop.xlane.xlu0 %1134
        %v1136 = vmax.f32 %v1068, %v1069
        %1137 = vmax.xlane.f32.xlu0 %v1136
        %v1138 = vpop.xlane.xlu0 %1137
        %v1139 = vmax.f32 %v1070, %v1071
        %1140 = vmax.xlane.f32.xlu0 %v1139
        %v1141 = vpop.xlane.xlu0 %1140
        %v1142 = vmax.f32 %v1072, %v1073
        %1143 = vmax.xlane.f32.xlu0 %v1142
        %v1144 = vpop.xlane.xlu0 %1143
        %v1145 = vmax.f32 %v1074, %v1075
        %1146 = vmax.xlane.f32.xlu0 %v1145
        %v1147 = vpop.xlane.xlu0 %1146
        %v1148 = vmax.f32 %v1076, %v1077
        %1149 = vmax.xlane.f32.xlu0 %v1148
        %v1150 = vpop.xlane.xlu0 %1149
        %v1151 = vmax.f32 %v1078, %v1079
        %1152 = vmax.xlane.f32.xlu0 %v1151
        %v1153 = vpop.xlane.xlu0 %1152
        %v1154 = vmax.f32 %v1080, %v1081
        %1155 = vmax.xlane.f32.xlu0 %v1154
        %v1156 = vpop.xlane.xlu0 %1155
        %v1157 = vmax.f32 %v1082, %v1083
        %1158 = vmax.xlane.f32.xlu0 %v1157
        %v1159 = vpop.xlane.xlu0 %1158
        %v1160 = vmax.f32 %v1084, %v1085
        %1161 = vmax.xlane.f32.xlu0 %v1160
        %v1162 = vpop.xlane.xlu0 %1161
        %v1163 = vmax.f32 %v1086, %v1087
        %1164 = vmax.xlane.f32.xlu0 %v1163
        %v1165 = vpop.xlane.xlu0 %1164
        %v1166 = vmax.f32 %v1088, %v1089
        %1167 = vmax.xlane.f32.xlu0 %v1166
        %v1168 = vpop.xlane.xlu0 %1167
        %v1169 = vmax.f32 %v1090, %v1091
        %1170 = vmax.xlane.f32.xlu0 %v1169
        %v1171 = vpop.xlane.xlu0 %1170
        %v1172 = vmax.f32 %v1092, %v1093
        %1173 = vmax.xlane.f32.xlu0 %v1172
        %v1174 = vpop.xlane.xlu0 %1173
        %v1175 = vmax.f32 %v1094, %v1095
        %1176 = vmax.xlane.f32.xlu0 %v1175
        %v1177 = vpop.xlane.xlu0 %1176
        %v1178 = vmax.f32 %v1096, %v1097
        %1179 = vmax.xlane.f32.xlu0 %v1178
        %v1180 = vpop.xlane.xlu0 %1179
        %v1181 = vmax.f32 %v1098, %v1099
        %1182 = vmax.xlane.f32.xlu0 %v1181
        %v1183 = vpop.xlane.xlu0 %1182
        %v1184 = vmax.f32 %v1100, %v1101
        %1185 = vmax.xlane.f32.xlu0 %v1184
        %v1186 = vpop.xlane.xlu0 %1185
        %v1187 = vmax.f32 %v1102, %v1103
        %1188 = vmax.xlane.f32.xlu0 %v1187
        %v1189 = vpop.xlane.xlu0 %1188
        %v1190 = vmax.f32 %v1104, %v1105
        %1191 = vmax.xlane.f32.xlu0 %v1190
        %v1192 = vpop.xlane.xlu0 %1191
        %v1193 = vmax.f32 %v1106, %v1107
        %1194 = vmax.xlane.f32.xlu0 %v1193
        %v1195 = vpop.xlane.xlu0 %1194
        %v1196 = vmax.f32 %v1108, %v1109
        %1197 = vmax.xlane.f32.xlu0 %v1196
        %v1198 = vpop.xlane.xlu0 %1197
        %v1199 = vmax.f32 %v1110, %v1111
        %1200 = vmax.xlane.f32.xlu0 %v1199
        %v1201 = vpop.xlane.xlu0 %1200
        %v1202 = vmax.f32 %v1112, %v1113
        %1203 = vmax.xlane.f32.xlu0 %v1202
        %v1204 = vpop.xlane.xlu0 %1203
        %v1205 = vmax.f32 %v1114, %v1115
        %1206 = vmax.xlane.f32.xlu0 %v1205
        %v1207 = vpop.xlane.xlu0 %1206
        %v1208 = vmax.f32 %v1116, %v1117
        %1209 = vmax.xlane.f32.xlu0 %v1208
        %v1210 = vpop.xlane.xlu0 %1209
        %v1211 = vmax.f32 %v1118, %v1119
        %1212 = vmax.xlane.f32.xlu0 %v1211
        %v1213 = vpop.xlane.xlu0 %1212
        %v1214 = vmax.f32 %v1120, %v1121
        %1215 = vmax.xlane.f32.xlu0 %v1214
        %v1216 = vpop.xlane.xlu0 %1215
        %v1217 = vmax.f32 %v1122, %v1123
        %1218 = vmax.xlane.f32.xlu0 %v1217
        %v1219 = vpop.xlane.xlu0 %1218
        %v1220 = vsub.f32 %v1060, %v1126
        %v1221 = vsub.f32 %v1061, %v1126
        %v1222 = vsub.f32 %v1062, %v1129
        %v1223 = vsub.f32 %v1063, %v1129
        %v1224 = vsub.f32 %v1064, %v1132
        %v1225 = vsub.f32 %v1065, %v1132
        %v1226 = vsub.f32 %v1066, %v1135
        %v1227 = vsub.f32 %v1067, %v1135
        %v1228 = vsub.f32 %v1068, %v1138
        %v1229 = vsub.f32 %v1069, %v1138
        %v1230 = vsub.f32 %v1070, %v1141
        %v1231 = vsub.f32 %v1071, %v1141
        %v1232 = vsub.f32 %v1072, %v1144
        %v1233 = vsub.f32 %v1073, %v1144
        %v1234 = vsub.f32 %v1074, %v1147
        %v1235 = vsub.f32 %v1075, %v1147
        %v1236 = vsub.f32 %v1076, %v1150
        %v1237 = vsub.f32 %v1077, %v1150
        %v1238 = vsub.f32 %v1078, %v1153
        %v1239 = vsub.f32 %v1079, %v1153
        %v1240 = vsub.f32 %v1080, %v1156
        %v1241 = vsub.f32 %v1081, %v1156
        %v1242 = vsub.f32 %v1082, %v1159
        %v1243 = vsub.f32 %v1083, %v1159
        %v1244 = vsub.f32 %v1084, %v1162
        %v1245 = vsub.f32 %v1085, %v1162
        %v1246 = vsub.f32 %v1086, %v1165
        %v1247 = vsub.f32 %v1087, %v1165
        %v1248 = vsub.f32 %v1088, %v1168
        %v1249 = vsub.f32 %v1089, %v1168
        %v1250 = vsub.f32 %v1090, %v1171
        %v1251 = vsub.f32 %v1091, %v1171
        %v1252 = vsub.f32 %v1092, %v1174
        %v1253 = vsub.f32 %v1093, %v1174
        %v1254 = vsub.f32 %v1094, %v1177
        %v1255 = vsub.f32 %v1095, %v1177
        %v1256 = vsub.f32 %v1096, %v1180
        %v1257 = vsub.f32 %v1097, %v1180
        %v1258 = vsub.f32 %v1098, %v1183
        %v1259 = vsub.f32 %v1099, %v1183
        %v1260 = vsub.f32 %v1100, %v1186
        %v1261 = vsub.f32 %v1101, %v1186
        %v1262 = vsub.f32 %v1102, %v1189
        %v1263 = vsub.f32 %v1103, %v1189
        %v1264 = vsub.f32 %v1104, %v1192
        %v1265 = vsub.f32 %v1105, %v1192
        %v1266 = vsub.f32 %v1106, %v1195
        %v1267 = vsub.f32 %v1107, %v1195
        %v1268 = vsub.f32 %v1108, %v1198
        %v1269 = vsub.f32 %v1109, %v1198
        %v1270 = vsub.f32 %v1110, %v1201
        %v1271 = vsub.f32 %v1111, %v1201
        %v1272 = vsub.f32 %v1112, %v1204
        %v1273 = vsub.f32 %v1113, %v1204
        %v1274 = vsub.f32 %v1114, %v1207
        %v1275 = vsub.f32 %v1115, %v1207
        %v1276 = vsub.f32 %v1116, %v1210
        %v1277 = vsub.f32 %v1117, %v1210
        %v1278 = vsub.f32 %v1118, %v1213
        %v1279 = vsub.f32 %v1119, %v1213
        %v1280 = vsub.f32 %v1120, %v1216
        %v1281 = vsub.f32 %v1121, %v1216
        %v1282 = vsub.f32 %v1122, %v1219
        %v1283 = vsub.f32 %v1123, %v1219
        %v1284 = vmul.f32 %v1220, 1.442695
        %v1285 = vpow.pop %v1284
        %v1286 = vmul.f32 %v1221, 1.442695
        %v1287 = vpow.pop %v1286
        %v1288 = vmul.f32 %v1222, 1.442695
        %v1289 = vpow.pop %v1288
        %v1290 = vmul.f32 %v1223, 1.442695
        %v1291 = vpow.pop %v1290
        %v1292 = vmul.f32 %v1224, 1.442695
        %v1293 = vpow.pop %v1292
        %v1294 = vmul.f32 %v1225, 1.442695
        %v1295 = vpow.pop %v1294
        %v1296 = vmul.f32 %v1226, 1.442695
        %v1297 = vpow.pop %v1296
        %v1298 = vmul.f32 %v1227, 1.442695
        %v1299 = vpow.pop %v1298
        %v1300 = vmul.f32 %v1228, 1.442695
        %v1301 = vpow.pop %v1300
        %v1302 = vmul.f32 %v1229, 1.442695
        %v1303 = vpow.pop %v1302
        %v1304 = vmul.f32 %v1230, 1.442695
        %v1305 = vpow.pop %v1304
        %v1306 = vmul.f32 %v1231, 1.442695
        %v1307 = vpow.pop %v1306
        %v1308 = vmul.f32 %v1232, 1.442695
        %v1309 = vpow.pop %v1308
        %v1310 = vmul.f32 %v1233, 1.442695
        %v1311 = vpow.pop %v1310
        %v1312 = vmul.f32 %v1234, 1.442695
        %v1313 = vpow.pop %v1312
        %v1314 = vmul.f32 %v1235, 1.442695
        %v1315 = vpow.pop %v1314
        %v1316 = vmul.f32 %v1236, 1.442695
        %v1317 = vpow.pop %v1316
        %v1318 = vmul.f32 %v1237, 1.442695
        %v1319 = vpow.pop %v1318
        %v1320 = vmul.f32 %v1238, 1.442695
        %v1321 = vpow.pop %v1320
        %v1322 = vmul.f32 %v1239, 1.442695
        %v1323 = vpow.pop %v1322
        %v1324 = vmul.f32 %v1240, 1.442695
        %v1325 = vpow.pop %v1324
        %v1326 = vmul.f32 %v1241, 1.442695
        %v1327 = vpow.pop %v1326
        %v1328 = vmul.f32 %v1242, 1.442695
        %v1329 = vpow.pop %v1328
        %v1330 = vmul.f32 %v1243, 1.442695
        %v1331 = vpow.pop %v1330
        %v1332 = vmul.f32 %v1244, 1.442695
        %v1333 = vpow.pop %v1332
        %v1334 = vmul.f32 %v1245, 1.442695
        %v1335 = vpow.pop %v1334
        %v1336 = vmul.f32 %v1246, 1.442695
        %v1337 = vpow.pop %v1336
        %v1338 = vmul.f32 %v1247, 1.442695
        %v1339 = vpow.pop %v1338
        %v1340 = vmul.f32 %v1248, 1.442695
        %v1341 = vpow.pop %v1340
        %v1342 = vmul.f32 %v1249, 1.442695
        %v1343 = vpow.pop %v1342
        %v1344 = vmul.f32 %v1250, 1.442695
        %v1345 = vpow.pop %v1344
        %v1346 = vmul.f32 %v1251, 1.442695
        %v1347 = vpow.pop %v1346
        %v1348 = vmul.f32 %v1252, 1.442695
        %v1349 = vpow.pop %v1348
        %v1350 = vmul.f32 %v1253, 1.442695
        %v1351 = vpow.pop %v1350
        %v1352 = vmul.f32 %v1254, 1.442695
        %v1353 = vpow.pop %v1352
        %v1354 = vmul.f32 %v1255, 1.442695
        %v1355 = vpow.pop %v1354
        %v1356 = vmul.f32 %v1256, 1.442695
        %v1357 = vpow.pop %v1356
        %v1358 = vmul.f32 %v1257, 1.442695
        %v1359 = vpow.pop %v1358
        %v1360 = vmul.f32 %v1258, 1.442695
        %v1361 = vpow.pop %v1360
        %v1362 = vmul.f32 %v1259, 1.442695
        %v1363 = vpow.pop %v1362
        %v1364 = vmul.f32 %v1260, 1.442695
        %v1365 = vpow.pop %v1364
        %v1366 = vmul.f32 %v1261, 1.442695
        %v1367 = vpow.pop %v1366
        %v1368 = vmul.f32 %v1262, 1.442695
        %v1369 = vpow.pop %v1368
        %v1370 = vmul.f32 %v1263, 1.442695
        %v1371 = vpow.pop %v1370
        %v1372 = vmul.f32 %v1264, 1.442695
        %v1373 = vpow.pop %v1372
        %v1374 = vmul.f32 %v1265, 1.442695
        %v1375 = vpow.pop %v1374
        %v1376 = vmul.f32 %v1266, 1.442695
        %v1377 = vpow.pop %v1376
        %v1378 = vmul.f32 %v1267, 1.442695
        %v1379 = vpow.pop %v1378
        %v1380 = vmul.f32 %v1268, 1.442695
        %v1381 = vpow.pop %v1380
        %v1382 = vmul.f32 %v1269, 1.442695
        %v1383 = vpow.pop %v1382
        %v1384 = vmul.f32 %v1270, 1.442695
        %v1385 = vpow.pop %v1384
        %v1386 = vmul.f32 %v1271, 1.442695
        %v1387 = vpow.pop %v1386
        %v1388 = vmul.f32 %v1272, 1.442695
        %v1389 = vpow.pop %v1388
        %v1390 = vmul.f32 %v1273, 1.442695
        %v1391 = vpow.pop %v1390
        %v1392 = vmul.f32 %v1274, 1.442695
        %v1393 = vpow.pop %v1392
        %v1394 = vmul.f32 %v1275, 1.442695
        %v1395 = vpow.pop %v1394
        %v1396 = vmul.f32 %v1276, 1.442695
        %v1397 = vpow.pop %v1396
        %v1398 = vmul.f32 %v1277, 1.442695
        %v1399 = vpow.pop %v1398
        %v1400 = vmul.f32 %v1278, 1.442695
        %v1401 = vpow.pop %v1400
        %v1402 = vmul.f32 %v1279, 1.442695
        %v1403 = vpow.pop %v1402
        %v1404 = vmul.f32 %v1280, 1.442695
        %v1405 = vpow.pop %v1404
        %v1406 = vmul.f32 %v1281, 1.442695
        %v1407 = vpow.pop %v1406
        %v1408 = vmul.f32 %v1282, 1.442695
        %v1409 = vpow.pop %v1408
        %v1410 = vmul.f32 %v1283, 1.442695
        %v1411 = vpow.pop %v1410
        %v1412 = vadd.f32 %v1285, %v1287
        %1413 = vadd.xlane.f32.xlu0 %v1412
        %v1414 = vpop.xlane.xlu0 %1413
        %v1415 = vadd.f32 %v1289, %v1291
        %1416 = vadd.xlane.f32.xlu0 %v1415
        %v1417 = vpop.xlane.xlu0 %1416
        %v1418 = vadd.f32 %v1293, %v1295
        %1419 = vadd.xlane.f32.xlu0 %v1418
        %v1420 = vpop.xlane.xlu0 %1419
        %v1421 = vadd.f32 %v1297, %v1299
        %1422 = vadd.xlane.f32.xlu0 %v1421
        %v1423 = vpop.xlane.xlu0 %1422
        %v1424 = vadd.f32 %v1301, %v1303
        %1425 = vadd.xlane.f32.xlu0 %v1424
        %v1426 = vpop.xlane.xlu0 %1425
        %v1427 = vadd.f32 %v1305, %v1307
        %1428 = vadd.xlane.f32.xlu0 %v1427
        %v1429 = vpop.xlane.xlu0 %1428
        %v1430 = vadd.f32 %v1309, %v1311
        %1431 = vadd.xlane.f32.xlu0 %v1430
        %v1432 = vpop.xlane.xlu0 %1431
        %v1433 = vadd.f32 %v1313, %v1315
        %1434 = vadd.xlane.f32.xlu0 %v1433
        %v1435 = vpop.xlane.xlu0 %1434
        %v1436 = vadd.f32 %v1317, %v1319
        %1437 = vadd.xlane.f32.xlu0 %v1436
        %v1438 = vpop.xlane.xlu0 %1437
        %v1439 = vadd.f32 %v1321, %v1323
        %1440 = vadd.xlane.f32.xlu0 %v1439
        %v1441 = vpop.xlane.xlu0 %1440
        %v1442 = vadd.f32 %v1325, %v1327
        %1443 = vadd.xlane.f32.xlu0 %v1442
        %v1444 = vpop.xlane.xlu0 %1443
        %v1445 = vadd.f32 %v1329, %v1331
        %1446 = vadd.xlane.f32.xlu0 %v1445
        %v1447 = vpop.xlane.xlu0 %1446
        %v1448 = vadd.f32 %v1333, %v1335
        %1449 = vadd.xlane.f32.xlu0 %v1448
        %v1450 = vpop.xlane.xlu0 %1449
        %v1451 = vadd.f32 %v1337, %v1339
        %1452 = vadd.xlane.f32.xlu0 %v1451
        %v1453 = vpop.xlane.xlu0 %1452
        %v1454 = vadd.f32 %v1341, %v1343
        %1455 = vadd.xlane.f32.xlu0 %v1454
        %v1456 = vpop.xlane.xlu0 %1455
        %v1457 = vadd.f32 %v1345, %v1347
        %1458 = vadd.xlane.f32.xlu0 %v1457
        %v1459 = vpop.xlane.xlu0 %1458
        %v1460 = vadd.f32 %v1349, %v1351
        %1461 = vadd.xlane.f32.xlu0 %v1460
        %v1462 = vpop.xlane.xlu0 %1461
        %v1463 = vadd.f32 %v1353, %v1355
        %1464 = vadd.xlane.f32.xlu0 %v1463
        %v1465 = vpop.xlane.xlu0 %1464
        %v1466 = vadd.f32 %v1357, %v1359
        %1467 = vadd.xlane.f32.xlu0 %v1466
        %v1468 = vpop.xlane.xlu0 %1467
        %v1469 = vadd.f32 %v1361, %v1363
        %1470 = vadd.xlane.f32.xlu0 %v1469
        %v1471 = vpop.xlane.xlu0 %1470
        %v1472 = vadd.f32 %v1365, %v1367
        %1473 = vadd.xlane.f32.xlu0 %v1472
        %v1474 = vpop.xlane.xlu0 %1473
        %v1475 = vadd.f32 %v1369, %v1371
        %1476 = vadd.xlane.f32.xlu0 %v1475
        %v1477 = vpop.xlane.xlu0 %1476
        %v1478 = vadd.f32 %v1373, %v1375
        %1479 = vadd.xlane.f32.xlu0 %v1478
        %v1480 = vpop.xlane.xlu0 %1479
        %v1481 = vadd.f32 %v1377, %v1379
        %1482 = vadd.xlane.f32.xlu0 %v1481
        %v1483 = vpop.xlane.xlu0 %1482
        %v1484 = vadd.f32 %v1381, %v1383
        %1485 = vadd.xlane.f32.xlu0 %v1484
        %v1486 = vpop.xlane.xlu0 %1485
        %v1487 = vadd.f32 %v1385, %v1387
        %1488 = vadd.xlane.f32.xlu0 %v1487
        %v1489 = vpop.xlane.xlu0 %1488
        %v1490 = vadd.f32 %v1389, %v1391
        %1491 = vadd.xlane.f32.xlu0 %v1490
        %v1492 = vpop.xlane.xlu0 %1491
        %v1493 = vadd.f32 %v1393, %v1395
        %1494 = vadd.xlane.f32.xlu0 %v1493
        %v1495 = vpop.xlane.xlu0 %1494
        %v1496 = vadd.f32 %v1397, %v1399
        %1497 = vadd.xlane.f32.xlu0 %v1496
        %v1498 = vpop.xlane.xlu0 %1497
        %v1499 = vadd.f32 %v1401, %v1403
        %1500 = vadd.xlane.f32.xlu0 %v1499
        %v1501 = vpop.xlane.xlu0 %1500
        %v1502 = vadd.f32 %v1405, %v1407
        %1503 = vadd.xlane.f32.xlu0 %v1502
        %v1504 = vpop.xlane.xlu0 %1503
        %v1505 = vadd.f32 %v1409, %v1411
        %1506 = vadd.xlane.f32.xlu0 %v1505
        %v1507 = vpop.xlane.xlu0 %1506
        %v1508 = vrcp.pop %v1414
        %v1509 = vrcp.pop %v1417
        %v1510 = vrcp.pop %v1420
        %v1511 = vrcp.pop %v1423
        %v1512 = vrcp.pop %v1426
        %v1513 = vrcp.pop %v1429
        %v1514 = vrcp.pop %v1432
        %v1515 = vrcp.pop %v1435
        %v1516 = vrcp.pop %v1438
        %v1517 = vrcp.pop %v1441
        %v1518 = vrcp.pop %v1444
        %v1519 = vrcp.pop %v1447
        %v1520 = vrcp.pop %v1450
        %v1521 = vrcp.pop %v1453
        %v1522 = vrcp.pop %v1456
        %v1523 = vrcp.pop %v1459
        %v1524 = vrcp.pop %v1462
        %v1525 = vrcp.pop %v1465
        %v1526 = vrcp.pop %v1468
        %v1527 = vrcp.pop %v1471
        %v1528 = vrcp.pop %v1474
        %v1529 = vrcp.pop %v1477
        %v1530 = vrcp.pop %v1480
        %v1531 = vrcp.pop %v1483
        %v1532 = vrcp.pop %v1486
        %v1533 = vrcp.pop %v1489
        %v1534 = vrcp.pop %v1492
        %v1535 = vrcp.pop %v1495
        %v1536 = vrcp.pop %v1498
        %v1537 = vrcp.pop %v1501
        %v1538 = vrcp.pop %v1504
        %v1539 = vrcp.pop %v1507
        %v1540 = vmul.f32 %v1285, %v1508
        %v1541 = vmul.f32 %v1287, %v1508
        %v1542 = vmul.f32 %v1289, %v1509
        %v1543 = vmul.f32 %v1291, %v1509
        %v1544 = vmul.f32 %v1293, %v1510
        %v1545 = vmul.f32 %v1295, %v1510
        %v1546 = vmul.f32 %v1297, %v1511
        %v1547 = vmul.f32 %v1299, %v1511
        %v1548 = vmul.f32 %v1301, %v1512
        %v1549 = vmul.f32 %v1303, %v1512
        %v1550 = vmul.f32 %v1305, %v1513
        %v1551 = vmul.f32 %v1307, %v1513
        %v1552 = vmul.f32 %v1309, %v1514
        %v1553 = vmul.f32 %v1311, %v1514
        %v1554 = vmul.f32 %v1313, %v1515
        %v1555 = vmul.f32 %v1315, %v1515
        %v1556 = vmul.f32 %v1317, %v1516
        %v1557 = vmul.f32 %v1319, %v1516
        %v1558 = vmul.f32 %v1321, %v1517
        %v1559 = vmul.f32 %v1323, %v1517
        %v1560 = vmul.f32 %v1325, %v1518
        %v1561 = vmul.f32 %v1327, %v1518
        %v1562 = vmul.f32 %v1329, %v1519
        %v1563 = vmul.f32 %v1331, %v1519
        %v1564 = vmul.f32 %v1333, %v1520
        %v1565 = vmul.f32 %v1335, %v1520
        %v1566 = vmul.f32 %v1337, %v1521
        %v1567 = vmul.f32 %v1339, %v1521
        %v1568 = vmul.f32 %v1341, %v1522
        %v1569 = vmul.f32 %v1343, %v1522
        %v1570 = vmul.f32 %v1345, %v1523
        %v1571 = vmul.f32 %v1347, %v1523
        %v1572 = vmul.f32 %v1349, %v1524
        %v1573 = vmul.f32 %v1351, %v1524
        %v1574 = vmul.f32 %v1353, %v1525
        %v1575 = vmul.f32 %v1355, %v1525
        %v1576 = vmul.f32 %v1357, %v1526
        %v1577 = vmul.f32 %v1359, %v1526
        %v1578 = vmul.f32 %v1361, %v1527
        %v1579 = vmul.f32 %v1363, %v1527
        %v1580 = vmul.f32 %v1365, %v1528
        %v1581 = vmul.f32 %v1367, %v1528
        %v1582 = vmul.f32 %v1369, %v1529
        %v1583 = vmul.f32 %v1371, %v1529
        %v1584 = vmul.f32 %v1373, %v1530
        %v1585 = vmul.f32 %v1375, %v1530
        %v1586 = vmul.f32 %v1377, %v1531
        %v1587 = vmul.f32 %v1379, %v1531
        %v1588 = vmul.f32 %v1381, %v1532
        %v1589 = vmul.f32 %v1383, %v1532
        %v1590 = vmul.f32 %v1385, %v1533
        %v1591 = vmul.f32 %v1387, %v1533
        %v1592 = vmul.f32 %v1389, %v1534
        %v1593 = vmul.f32 %v1391, %v1534
        %v1594 = vmul.f32 %v1393, %v1535
        %v1595 = vmul.f32 %v1395, %v1535
        %v1596 = vmul.f32 %v1397, %v1536
        %v1597 = vmul.f32 %v1399, %v1536
        %v1598 = vmul.f32 %v1401, %v1537
        %v1599 = vmul.f32 %v1403, %v1537
        %v1600 = vmul.f32 %v1405, %v1538
        %v1601 = vmul.f32 %v1407, %v1538
        %v1602 = vmul.f32 %v1409, %v1539
        %v1603 = vmul.f32 %v1411, %v1539
        %v1604 = vpack.c.bf16 %v341, %v341
        %v1605 = vpack.c.bf16 %v343, %v343
        %v1606 = vpack.c.bf16 %v1542, %v1540
        %v1607 = vpack.c.bf16 %v1543, %v1541
        %v1608 = vpack.c.bf16 %v1546, %v1544
        %v1609 = vpack.c.bf16 %v1547, %v1545
        %v1610 = vpack.c.bf16 %v1550, %v1548
        %v1611 = vpack.c.bf16 %v1551, %v1549
        %v1612 = vpack.c.bf16 %v1554, %v1552
        %v1613 = vpack.c.bf16 %v1555, %v1553
        %v1614 = vpack.c.bf16 %v1558, %v1556
        %v1615 = vpack.c.bf16 %v1559, %v1557
        %v1616 = vpack.c.bf16 %v1562, %v1560
        %v1617 = vpack.c.bf16 %v1563, %v1561
        %v1618 = vpack.c.bf16 %v1566, %v1564
        %v1619 = vpack.c.bf16 %v1567, %v1565
        %v1620 = vpack.c.bf16 %v1570, %v1568
        %v1621 = vpack.c.bf16 %v1571, %v1569
        %v1622 = vpack.c.bf16 %v1574, %v1572
        %v1623 = vpack.c.bf16 %v1575, %v1573
        %v1624 = vpack.c.bf16 %v1578, %v1576
        %v1625 = vpack.c.bf16 %v1579, %v1577
        %v1626 = vpack.c.bf16 %v1582, %v1580
        %v1627 = vpack.c.bf16 %v1583, %v1581
        %v1628 = vpack.c.bf16 %v1586, %v1584
        %v1629 = vpack.c.bf16 %v1587, %v1585
        %v1630 = vpack.c.bf16 %v1590, %v1588
        %v1631 = vpack.c.bf16 %v1591, %v1589
        %v1632 = vpack.c.bf16 %v1594, %v1592
        %v1633 = vpack.c.bf16 %v1595, %v1593
        %v1634 = vpack.c.bf16 %v1598, %v1596
        %v1635 = vpack.c.bf16 %v1599, %v1597
        %v1636 = vpack.c.bf16 %v1602, %v1600
        %v1637 = vpack.c.bf16 %v1603, %v1601
        %1638 = vmatprep.subr.bf16.mxu0 %v1607
        %1639 = vmatpush1.bf16.xpose.msra.mxu0 %v1606
        %1640 = vmatprep.subr.bf16.mxu0 %v1609
        %1641 = vmatpush1.bf16.xpose.msra.mxu0 %v1608
        %1642 = vmatprep.subr.bf16.mxu0 %v1611
        %1643 = vmatpush1.bf16.xpose.msra.mxu0 %v1610
        %1644 = vmatprep.subr.bf16.mxu0 %v1613
        %1645 = vmatpush1.bf16.xpose.msra.mxu0 %v1612
        %1646 = vmatprep.subr.bf16.mxu0 %v1615
        %1647 = vmatpush1.bf16.xpose.msra.mxu0 %v1614
        %1648 = vmatprep.subr.bf16.mxu0 %v1617
        %1649 = vmatpush1.bf16.xpose.msra.mxu0 %v1616
        %1650 = vmatprep.subr.bf16.mxu0 %v1619
        %1651 = vmatpush1.bf16.xpose.msra.mxu0 %v1618
        %1652 = vmatprep.subr.bf16.mxu0 %v1621
        %1653 = vmatpush1.bf16.xpose.msra.mxu0 %v1620
        %1654 = vmatprep.subr.bf16.mxu0 %v1623
        %1655 = vmatpush1.bf16.xpose.msra.mxu0 %v1622
        %1656 = vmatprep.subr.bf16.mxu0 %v1625
        %1657 = vmatpush1.bf16.xpose.msra.mxu0 %v1624
        %1658 = vmatprep.subr.bf16.mxu0 %v1627
        %1659 = vmatpush1.bf16.xpose.msra.mxu0 %v1626
        %1660 = vmatprep.subr.bf16.mxu0 %v1629
        %1661 = vmatpush1.bf16.xpose.msra.mxu0 %v1628
        %1662 = vmatprep.subr.bf16.mxu0 %v1631
        %1663 = vmatpush1.bf16.xpose.msra.mxu0 %v1630
        %1664 = vmatprep.subr.bf16.mxu0 %v1633
        %1665 = vmatpush1.bf16.xpose.msra.mxu0 %v1632
        %1666 = vmatprep.subr.bf16.mxu0 %v1635
        %1667 = vmatpush1.bf16.xpose.msra.mxu0 %v1634
        %1668 = vmatprep.subr.bf16.mxu0 %v1637
        %1669 = vmatpush1.bf16.xpose.msra.mxu0 %v1636
        %1670 = vmatprep.mubr.bf16.mxu0 %v1605
        %1671 = vmatmul.mubr.bf16.gmra.mrb[0].mxu0 %v1604
        %v1672 = vpop.f32.mrb[0].mxu0
        %v1673 = vadd.f32 0.0, %v1672
        %v1674 = vpop.f32.mrb[0].mxu0
        %v1675 = vadd.f32 0.0, %v1674
        %v1676 = vpop.f32.mrb[0].mxu0
        %v1677 = vpop.f32.mrb[0].mxu0
        %1678 = vdwg.mxu0
        %1679 = vst [vmem:[#allocation2] sm:$0xf] %v1673
        %1680 = vst [vmem:[#allocation2 + $0x8] sm:$0xf] %v1675
        %1681 = vrot.lane.b32.xlu0 %v361, 124
        %v1682 = vpop.permute.xlu0 %1681
        %1683 = vrot.lane.b32.xlu0 %v362, 124
        %v1684 = vpop.permute.xlu0 %1683
        %1685 = vrot.lane.b32.xlu0 %v363, 124
        %v1686 = vpop.permute.xlu0 %1685
        %1687 = vrot.lane.b32.xlu0 %v364, 124
        %v1688 = vpop.permute.xlu0 %1687
        %1689 = vrot.lane.b32.xlu0 %v365, 124
        %v1690 = vpop.permute.xlu0 %1689
        %1691 = vrot.lane.b32.xlu0 %v366, 124
        %v1692 = vpop.permute.xlu0 %1691
        %1693 = vrot.lane.b32.xlu0 %v367, 124
        %v1694 = vpop.permute.xlu0 %1693
        %1695 = vrot.lane.b32.xlu0 %v368, 124
        %v1696 = vpop.permute.xlu0 %1695
        %1697 = vrot.lane.b32.xlu0 %v369, 124
        %v1698 = vpop.permute.xlu0 %1697
        %1699 = vrot.lane.b32.xlu0 %v370, 124
        %v1700 = vpop.permute.xlu0 %1699
        %1701 = vrot.lane.b32.xlu0 %v371, 124
        %v1702 = vpop.permute.xlu0 %1701
        %1703 = vrot.lane.b32.xlu0 %v372, 124
        %v1704 = vpop.permute.xlu0 %1703
        %1705 = vrot.lane.b32.xlu0 %v373, 124
        %v1706 = vpop.permute.xlu0 %1705
        %1707 = vrot.lane.b32.xlu0 %v374, 124
        %v1708 = vpop.permute.xlu0 %1707
        %1709 = vrot.lane.b32.xlu0 %v375, 124
        %v1710 = vpop.permute.xlu0 %1709
        %1711 = vrot.lane.b32.xlu0 %v376, 124
        %v1712 = vpop.permute.xlu0 %1711
        %1713 = vrot.lane.b32.xlu0 %v393, 124
        %v1714 = vpop.permute.xlu0 %1713
        %1715 = vrot.lane.b32.xlu0 %v394, 124
        %v1716 = vpop.permute.xlu0 %1715
        %1717 = vrot.lane.b32.xlu0 %v395, 124
        %v1718 = vpop.permute.xlu0 %1717
        %1719 = vrot.lane.b32.xlu0 %v396, 124
        %v1720 = vpop.permute.xlu0 %1719
        %1721 = vrot.lane.b32.xlu0 %v397, 124
        %v1722 = vpop.permute.xlu0 %1721
        %1723 = vrot.lane.b32.xlu0 %v398, 124
        %v1724 = vpop.permute.xlu0 %1723
        %1725 = vrot.lane.b32.xlu0 %v399, 124
        %v1726 = vpop.permute.xlu0 %1725
        %1727 = vrot.lane.b32.xlu0 %v400, 124
        %v1728 = vpop.permute.xlu0 %1727
        %1729 = vrot.lane.b32.xlu0 %v401, 124
        %v1730 = vpop.permute.xlu0 %1729
        %1731 = vrot.lane.b32.xlu0 %v402, 124
        %v1732 = vpop.permute.xlu0 %1731
        %1733 = vrot.lane.b32.xlu0 %v403, 124
        %v1734 = vpop.permute.xlu0 %1733
        %1735 = vrot.lane.b32.xlu0 %v404, 124
        %v1736 = vpop.permute.xlu0 %1735
        %1737 = vrot.lane.b32.xlu0 %v405, 124
        %v1738 = vpop.permute.xlu0 %1737
        %1739 = vrot.lane.b32.xlu0 %v406, 124
        %v1740 = vpop.permute.xlu0 %1739
        %1741 = vrot.lane.b32.xlu0 %v407, 124
        %v1742 = vpop.permute.xlu0 %1741
        %1743 = vrot.lane.b32.xlu0 %v408, 124
        %v1744 = vpop.permute.xlu0 %1743
        %v1745 = vrot.slane %v335, 4
        %v1746 = vrot.slane %v337, 4
        %v1747 = vsel %vm247, %v1682, 0
        %v1749 = vsel %vm247, %v1684, 0
        %v1751 = vsel %vm247, %v1686, 0
        %v1753 = vsel %vm247, %v1688, 0
        %v1755 = vsel %vm247, %v1690, 0
        %v1757 = vsel %vm247, %v1692, 0
        %v1759 = vsel %vm247, %v1694, 0
        %v1761 = vsel %vm247, %v1696, 0
        %v1763 = vsel %vm247, %v1698, 0
        %v1765 = vsel %vm247, %v1700, 0
        %v1767 = vsel %vm247, %v1702, 0
        %v1769 = vsel %vm247, %v1704, 0
        %v1771 = vsel %vm247, %v1706, 0
        %v1773 = vsel %vm247, %v1708, 0
        %v1775 = vsel %vm247, %v1710, 0
        %v1777 = vsel %vm247, %v1712, 0
        %v1779 = vsel %vm247, %v1714, 0
        %v1781 = vsel %vm247, %v1716, 0
        %v1783 = vsel %vm247, %v1718, 0
        %v1785 = vsel %vm247, %v1720, 0
        %v1787 = vsel %vm247, %v1722, 0
        %v1789 = vsel %vm247, %v1724, 0
        %v1791 = vsel %vm247, %v1726, 0
        %v1793 = vsel %vm247, %v1728, 0
        %v1795 = vsel %vm247, %v1730, 0
        %v1797 = vsel %vm247, %v1732, 0
        %v1799 = vsel %vm247, %v1734, 0
        %v1801 = vsel %vm247, %v1736, 0
        %v1803 = vsel %vm247, %v1738, 0
        %v1805 = vsel %vm247, %v1740, 0
        %v1807 = vsel %vm247, %v1742, 0
        %v1809 = vsel %vm247, %v1744, 0
        %v1811 = vsel %vm257, %v1745, 0
        %v1813 = vsel %vm257, %v1746, 0
        %1815 = vmatprep.subr.mxu0 %v1813
        %1816 = vmatpush1.msra.mxu0 %v1811
        %1817 = vmatprep.subr.mxu0 0.0
        %1818 = vmatpush1.msra.mxu0 0.0
        %1819 = vmatprep.subr.mxu0 0.0
        %1820 = vmatpush1.msra.mxu0 0.0
        %1821 = vmatprep.subr.mxu0 0.0
        %1822 = vmatpush1.msra.mxu0 0.0
        %1823 = vmatprep.subr.mxu0 0.0
        %1824 = vmatpush1.msra.mxu0 0.0
        %1825 = vmatprep.subr.mxu0 0.0
        %1826 = vmatpush1.msra.mxu0 0.0
        %1827 = vmatprep.subr.mxu0 0.0
        %1828 = vmatpush1.msra.mxu0 0.0
        %1829 = vmatprep.subr.mxu0 0.0
        %1830 = vmatpush1.msra.mxu0 0.0
        %1831 = vmatprep.subr.mxu0 0.0
        %1832 = vmatpush1.msra.mxu0 0.0
        %1833 = vmatprep.subr.mxu0 0.0
        %1834 = vmatpush1.msra.mxu0 0.0
        %1835 = vmatprep.subr.mxu0 0.0
        %1836 = vmatpush1.msra.mxu0 0.0
        %1837 = vmatprep.subr.mxu0 0.0
        %1838 = vmatpush1.msra.mxu0 0.0
        %1839 = vmatprep.subr.mxu0 0.0
        %1840 = vmatpush1.msra.mxu0 0.0
        %1841 = vmatprep.subr.mxu0 0.0
        %1842 = vmatpush1.msra.mxu0 0.0
        %1843 = vmatprep.subr.mxu0 0.0
        %1844 = vmatpush1.msra.mxu0 0.0
        %1845 = vmatprep.subr.mxu0 0.0
        %1846 = vmatpush1.msra.mxu0 0.0
        %1847 = vmatprep.subr.mxu0 0.0
        %1848 = vmatpush1.msra.mxu0 0.0
        %1849 = vmatprep.subr.mxu0 0.0
        %1850 = vmatpush1.msra.mxu0 0.0
        %1851 = vmatprep.subr.mxu0 0.0
        %1852 = vmatpush1.msra.mxu0 0.0
        %1853 = vmatprep.subr.mxu0 0.0
        %1854 = vmatpush1.msra.mxu0 0.0
        %1855 = vmatprep.subr.mxu0 0.0
        %1856 = vmatpush1.msra.mxu0 0.0
        %1857 = vmatprep.subr.mxu0 0.0
        %1858 = vmatpush1.msra.mxu0 0.0
        %1859 = vmatprep.subr.mxu0 0.0
        %1860 = vmatpush1.msra.mxu0 0.0
        %1861 = vmatprep.subr.mxu0 0.0
        %1862 = vmatpush1.msra.mxu0 0.0
        %1863 = vmatprep.subr.mxu0 0.0
        %1864 = vmatpush1.msra.mxu0 0.0
        %1865 = vmatprep.subr.mxu0 0.0
        %1866 = vmatpush1.msra.mxu0 0.0
        %1867 = vmatprep.subr.mxu0 0.0
        %1868 = vmatpush1.msra.mxu0 0.0
        %1869 = vmatprep.subr.mxu0 0.0
        %1870 = vmatpush1.msra.mxu0 0.0
        %1871 = vmatprep.subr.mxu0 0.0
        %1872 = vmatpush1.msra.mxu0 0.0
        %1873 = vmatprep.subr.mxu0 0.0
        %1874 = vmatpush1.msra.mxu0 0.0
        %1875 = vmatprep.subr.mxu0 0.0
        %1876 = vmatpush1.msra.mxu0 0.0
        %1877 = vmatprep.subr.mxu0 0.0
        %1878 = vmatpush1.msra.mxu0 0.0
        %1879 = vmatprep.mubr.f32.mxu0 0.0
        %1880 = vmatmul.mubr.f32.gmra.mrb[0].mxu0 %v1747
        %v1881 = vpop.f32.mrb[0].mxu0
        %v1882 = vadd.f32 0.0, %v1881
        %v1883 = vpop.f32.mrb[0].mxu0
        %v1884 = vadd.f32 0.0, %v1883
        %1885 = vmatprep.mubr.f32.mxu0 0.0
        %1886 = vmatmul.mubr.f32.gmra.mrb[0].mxu0 %v1749
        %v1887 = vpop.f32.mrb[0].mxu0
        %v1888 = vadd.f32 0.0, %v1887
        %v1889 = vpop.f32.mrb[0].mxu0
        %v1890 = vadd.f32 0.0, %v1889
        %1891 = vmatprep.mubr.f32.mxu0 0.0
        %1892 = vmatmul.mubr.f32.gmra.mrb[0].mxu0 %v1751
        %v1893 = vpop.f32.mrb[0].mxu0
        %v1894 = vadd.f32 0.0, %v1893
        %v1895 = vpop.f32.mrb[0].mxu0
        %v1896 = vadd.f32 0.0, %v1895
        %1897 = vmatprep.mubr.f32.mxu0 0.0
        %1898 = vmatmul.mubr.f32.gmra.mrb[0].mxu0 %v1753
        %v1899 = vpop.f32.mrb[0].mxu0
        %v1900 = vadd.f32 0.0, %v1899
        %v1901 = vpop.f32.mrb[0].mxu0
        %v1902 = vadd.f32 0.0, %v1901
        %1903 = vmatprep.mubr.f32.mxu0 0.0
        %1904 = vmatmul.mubr.f32.gmra.mrb[0].mxu0 %v1755
        %v1905 = vpop.f32.mrb[0].mxu0
        %v1906 = vadd.f32 0.0, %v1905
        %v1907 = vpop.f32.mrb[0].mxu0
        %v1908 = vadd.f32 0.0, %v1907
        %1909 = vmatprep.mubr.f32.mxu0 0.0
        %1910 = vmatmul.mubr.f32.gmra.mrb[0].mxu0 %v1757
        %v1911 = vpop.f32.mrb[0].mxu0
        %v1912 = vadd.f32 0.0, %v1911
        %v1913 = vpop.f32.mrb[0].mxu0
        %v1914 = vadd.f32 0.0, %v1913
        %1915 = vmatprep.mubr.f32.mxu0 0.0
        %1916 = vmatmul.mubr.f32.gmra.mrb[0].mxu0 %v1759
        %v1917 = vpop.f32.mrb[0].mxu0
        %v1918 = vadd.f32 0.0, %v1917
        %v1919 = vpop.f32.mrb[0].mxu0
        %v1920 = vadd.f32 0.0, %v1919
        %1921 = vmatprep.mubr.f32.mxu0 0.0
        %1922 = vmatmul.mubr.f32.gmra.mrb[0].mxu0 %v1761
        %v1923 = vpop.f32.mrb[0].mxu0
        %v1924 = vadd.f32 0.0, %v1923
        %v1925 = vpop.f32.mrb[0].mxu0
        %v1926 = vadd.f32 0.0, %v1925
        %1927 = vmatprep.mubr.f32.mxu0 0.0
        %1928 = vmatmul.mubr.f32.gmra.mrb[0].mxu0 %v1763
        %v1929 = vpop.f32.mrb[0].mxu0
        %v1930 = vadd.f32 0.0, %v1929
        %v1931 = vpop.f32.mrb[0].mxu0
        %v1932 = vadd.f32 0.0, %v1931
        %1933 = vmatprep.mubr.f32.mxu0 0.0
        %1934 = vmatmul.mubr.f32.gmra.mrb[0].mxu0 %v1765
        %v1935 = vpop.f32.mrb[0].mxu0
        %v1936 = vadd.f32 0.0, %v1935
        %v1937 = vpop.f32.mrb[0].mxu0
        %v1938 = vadd.f32 0.0, %v1937
        %1939 = vmatprep.mubr.f32.mxu0 0.0
        %1940 = vmatmul.mubr.f32.gmra.mrb[0].mxu0 %v1767
        %v1941 = vpop.f32.mrb[0].mxu0
        %v1942 = vadd.f32 0.0, %v1941
        %v1943 = vpop.f32.mrb[0].mxu0
        %v1944 = vadd.f32 0.0, %v1943
        %1945 = vmatprep.mubr.f32.mxu0 0.0
        %1946 = vmatmul.mubr.f32.gmra.mrb[0].mxu0 %v1769
        %v1947 = vpop.f32.mrb[0].mxu0
        %v1948 = vadd.f32 0.0, %v1947
        %v1949 = vpop.f32.mrb[0].mxu0
        %v1950 = vadd.f32 0.0, %v1949
        %1951 = vmatprep.mubr.f32.mxu0 0.0
        %1952 = vmatmul.mubr.f32.gmra.mrb[0].mxu0 %v1771
        %v1953 = vpop.f32.mrb[0].mxu0
        %v1954 = vadd.f32 0.0, %v1953
        %v1955 = vpop.f32.mrb[0].mxu0
        %v1956 = vadd.f32 0.0, %v1955
        %1957 = vmatprep.mubr.f32.mxu0 0.0
        %1958 = vmatmul.mubr.f32.gmra.mrb[0].mxu0 %v1773
        %v1959 = vpop.f32.mrb[0].mxu0
        %v1960 = vadd.f32 0.0, %v1959
        %v1961 = vpop.f32.mrb[0].mxu0
        %v1962 = vadd.f32 0.0, %v1961
        %1963 = vmatprep.mubr.f32.mxu0 0.0
        %1964 = vmatmul.mubr.f32.gmra.mrb[0].mxu0 %v1775
        %v1965 = vpop.f32.mrb[0].mxu0
        %v1966 = vadd.f32 0.0, %v1965
        %v1967 = vpop.f32.mrb[0].mxu0
        %v1968 = vadd.f32 0.0, %v1967
        %1969 = vmatprep.mubr.f32.mxu0 0.0
        %1970 = vmatmul.mubr.f32.gmra.mrb[0].mxu0 %v1777
        %v1971 = vpop.f32.mrb[0].mxu0
        %v1972 = vadd.f32 0.0, %v1971
        %v1973 = vpop.f32.mrb[0].mxu0
        %v1974 = vadd.f32 0.0, %v1973
        %1975 = vmatprep.mubr.f32.mxu0 0.0
        %1976 = vmatmul.mubr.f32.gmra.mrb[0].mxu0 %v1779
        %v1977 = vpop.f32.mrb[0].mxu0
        %v1978 = vadd.f32 0.0, %v1977
        %v1979 = vpop.f32.mrb[0].mxu0
        %v1980 = vadd.f32 0.0, %v1979
        %1981 = vmatprep.mubr.f32.mxu0 0.0
        %1982 = vmatmul.mubr.f32.gmra.mrb[0].mxu0 %v1781
        %v1983 = vpop.f32.mrb[0].mxu0
        %v1984 = vadd.f32 0.0, %v1983
        %v1985 = vpop.f32.mrb[0].mxu0
        %v1986 = vadd.f32 0.0, %v1985
        %1987 = vmatprep.mubr.f32.mxu0 0.0
        %1988 = vmatmul.mubr.f32.gmra.mrb[0].mxu0 %v1783
        %v1989 = vpop.f32.mrb[0].mxu0
        %v1990 = vadd.f32 0.0, %v1989
        %v1991 = vpop.f32.mrb[0].mxu0
        %v1992 = vadd.f32 0.0, %v1991
        %1993 = vmatprep.mubr.f32.mxu0 0.0
        %1994 = vmatmul.mubr.f32.gmra.mrb[0].mxu0 %v1785
        %v1995 = vpop.f32.mrb[0].mxu0
        %v1996 = vadd.f32 0.0, %v1995
        %v1997 = vpop.f32.mrb[0].mxu0
        %v1998 = vadd.f32 0.0, %v1997
        %1999 = vmatprep.mubr.f32.mxu0 0.0
        %2000 = vmatmul.mubr.f32.gmra.mrb[0].mxu0 %v1787
        %v2001 = vpop.f32.mrb[0].mxu0
        %v2002 = vadd.f32 0.0, %v2001
        %v2003 = vpop.f32.mrb[0].mxu0
        %v2004 = vadd.f32 0.0, %v2003
        %2005 = vmatprep.mubr.f32.mxu0 0.0
        %2006 = vmatmul.mubr.f32.gmra.mrb[0].mxu0 %v1789
        %v2007 = vpop.f32.mrb[0].mxu0
        %v2008 = vadd.f32 0.0, %v2007
        %v2009 = vpop.f32.mrb[0].mxu0
        %v2010 = vadd.f32 0.0, %v2009
        %2011 = vmatprep.mubr.f32.mxu0 0.0
        %2012 = vmatmul.mubr.f32.gmra.mrb[0].mxu0 %v1791
        %v2013 = vpop.f32.mrb[0].mxu0
        %v2014 = vadd.f32 0.0, %v2013
        %v2015 = vpop.f32.mrb[0].mxu0
        %v2016 = vadd.f32 0.0, %v2015
        %2017 = vmatprep.mubr.f32.mxu0 0.0
        %2018 = vmatmul.mubr.f32.gmra.mrb[0].mxu0 %v1793
        %v2019 = vpop.f32.mrb[0].mxu0
        %v2020 = vadd.f32 0.0, %v2019
        %v2021 = vpop.f32.mrb[0].mxu0
        %v2022 = vadd.f32 0.0, %v2021
        %2023 = vmatprep.mubr.f32.mxu0 0.0
        %2024 = vmatmul.mubr.f32.gmra.mrb[0].mxu0 %v1795
        %v2025 = vpop.f32.mrb[0].mxu0
        %v2026 = vadd.f32 0.0, %v2025
        %v2027 = vpop.f32.mrb[0].mxu0
        %v2028 = vadd.f32 0.0, %v2027
        %2029 = vmatprep.mubr.f32.mxu0 0.0
        %2030 = vmatmul.mubr.f32.gmra.mrb[0].mxu0 %v1797
        %v2031 = vpop.f32.mrb[0].mxu0
        %v2032 = vadd.f32 0.0, %v2031
        %v2033 = vpop.f32.mrb[0].mxu0
        %v2034 = vadd.f32 0.0, %v2033
        %2035 = vmatprep.mubr.f32.mxu0 0.0
        %2036 = vmatmul.mubr.f32.gmra.mrb[0].mxu0 %v1799
        %v2037 = vpop.f32.mrb[0].mxu0
        %v2038 = vadd.f32 0.0, %v2037
        %v2039 = vpop.f32.mrb[0].mxu0
        %v2040 = vadd.f32 0.0, %v2039
        %2041 = vmatprep.mubr.f32.mxu0 0.0
        %2042 = vmatmul.mubr.f32.gmra.mrb[0].mxu0 %v1801
        %v2043 = vpop.f32.mrb[0].mxu0
        %v2044 = vadd.f32 0.0, %v2043
        %v2045 = vpop.f32.mrb[0].mxu0
        %v2046 = vadd.f32 0.0, %v2045
        %2047 = vmatprep.mubr.f32.mxu0 0.0
        %2048 = vmatmul.mubr.f32.gmra.mrb[0].mxu0 %v1803
        %v2049 = vpop.f32.mrb[0].mxu0
        %v2050 = vadd.f32 0.0, %v2049
        %v2051 = vpop.f32.mrb[0].mxu0
        %v2052 = vadd.f32 0.0, %v2051
        %2053 = vmatprep.mubr.f32.mxu0 0.0
        %2054 = vmatmul.mubr.f32.gmra.mrb[0].mxu0 %v1805
        %v2055 = vpop.f32.mrb[0].mxu0
        %v2056 = vadd.f32 0.0, %v2055
        %v2057 = vpop.f32.mrb[0].mxu0
        %v2058 = vadd.f32 0.0, %v2057
        %2059 = vmatprep.mubr.f32.mxu0 0.0
        %2060 = vmatmul.mubr.f32.gmra.mrb[0].mxu0 %v1807
        %v2061 = vpop.f32.mrb[0].mxu0
        %v2062 = vadd.f32 0.0, %v2061
        %v2063 = vpop.f32.mrb[0].mxu0
        %v2064 = vadd.f32 0.0, %v2063
        %2065 = vmatprep.mubr.f32.mxu0 0.0
        %2066 = vmatmul.mubr.f32.gmra.mrb[0].mxu0 %v1809
        %v2067 = vpop.f32.mrb[0].mxu0
        %v2068 = vadd.f32 0.0, %v2067
        %v2069 = vpop.f32.mrb[0].mxu0
        %v2070 = vadd.f32 0.0, %v2069
        %2071 = vdwg.mxu0
        %v2072 = vmul.f32 %v1882, 0.5
        %v2073 = vmul.f32 %v1884, 0.5
        %v2074 = vmul.f32 %v1888, 0.5
        %v2075 = vmul.f32 %v1890, 0.5
        %v2076 = vmul.f32 %v1894, 0.5
        %v2077 = vmul.f32 %v1896, 0.5
        %v2078 = vmul.f32 %v1900, 0.5
        %v2079 = vmul.f32 %v1902, 0.5
        %v2080 = vmul.f32 %v1906, 0.5
        %v2081 = vmul.f32 %v1908, 0.5
        %v2082 = vmul.f32 %v1912, 0.5
        %v2083 = vmul.f32 %v1914, 0.5
        %v2084 = vmul.f32 %v1918, 0.5
        %v2085 = vmul.f32 %v1920, 0.5
        %v2086 = vmul.f32 %v1924, 0.5
        %v2087 = vmul.f32 %v1926, 0.5
        %v2088 = vmul.f32 %v1930, 0.5
        %v2089 = vmul.f32 %v1932, 0.5
        %v2090 = vmul.f32 %v1936, 0.5
        %v2091 = vmul.f32 %v1938, 0.5
        %v2092 = vmul.f32 %v1942, 0.5
        %v2093 = vmul.f32 %v1944, 0.5
        %v2094 = vmul.f32 %v1948, 0.5
        %v2095 = vmul.f32 %v1950, 0.5
        %v2096 = vmul.f32 %v1954, 0.5
        %v2097 = vmul.f32 %v1956, 0.5
        %v2098 = vmul.f32 %v1960, 0.5
        %v2099 = vmul.f32 %v1962, 0.5
        %v2100 = vmul.f32 %v1966, 0.5
        %v2101 = vmul.f32 %v1968, 0.5
        %v2102 = vmul.f32 %v1972, 0.5
        %v2103 = vmul.f32 %v1974, 0.5
        %v2104 = vmul.f32 %v1978, 0.5
        %v2105 = vmul.f32 %v1980, 0.5
        %v2106 = vmul.f32 %v1984, 0.5
        %v2107 = vmul.f32 %v1986, 0.5
        %v2108 = vmul.f32 %v1990, 0.5
        %v2109 = vmul.f32 %v1992, 0.5
        %v2110 = vmul.f32 %v1996, 0.5
        %v2111 = vmul.f32 %v1998, 0.5
        %v2112 = vmul.f32 %v2002, 0.5
        %v2113 = vmul.f32 %v2004, 0.5
        %v2114 = vmul.f32 %v2008, 0.5
        %v2115 = vmul.f32 %v2010, 0.5
        %v2116 = vmul.f32 %v2014, 0.5
        %v2117 = vmul.f32 %v2016, 0.5
        %v2118 = vmul.f32 %v2020, 0.5
        %v2119 = vmul.f32 %v2022, 0.5
        %v2120 = vmul.f32 %v2026, 0.5
        %v2121 = vmul.f32 %v2028, 0.5
        %v2122 = vmul.f32 %v2032, 0.5
        %v2123 = vmul.f32 %v2034, 0.5
        %v2124 = vmul.f32 %v2038, 0.5
        %v2125 = vmul.f32 %v2040, 0.5
        %v2126 = vmul.f32 %v2044, 0.5
        %v2127 = vmul.f32 %v2046, 0.5
        %v2128 = vmul.f32 %v2050, 0.5
        %v2129 = vmul.f32 %v2052, 0.5
        %v2130 = vmul.f32 %v2056, 0.5
        %v2131 = vmul.f32 %v2058, 0.5
        %v2132 = vmul.f32 %v2062, 0.5
        %v2133 = vmul.f32 %v2064, 0.5
        %v2134 = vmul.f32 %v2068, 0.5
        %v2135 = vmul.f32 %v2070, 0.5
        %v2136 = vadd.f32 %v2072, %v573
        %v2137 = vadd.f32 %v2073, %v574
        %v2138 = vadd.f32 %v2074, %v575
        %v2139 = vadd.f32 %v2075, %v576
        %v2140 = vadd.f32 %v2076, %v577
        %v2141 = vadd.f32 %v2077, %v578
        %v2142 = vadd.f32 %v2078, %v579
        %v2143 = vadd.f32 %v2079, %v580
        %v2144 = vadd.f32 %v2080, %v581
        %v2145 = vadd.f32 %v2081, %v582
        %v2146 = vadd.f32 %v2082, %v583
        %v2147 = vadd.f32 %v2083, %v584
        %v2148 = vadd.f32 %v2084, %v585
        %v2149 = vadd.f32 %v2085, %v586
        %v2150 = vadd.f32 %v2086, %v587
        %v2151 = vadd.f32 %v2087, %v588
        %v2152 = vadd.f32 %v2088, %v589
        %v2153 = vadd.f32 %v2089, %v590
        %v2154 = vadd.f32 %v2090, %v591
        %v2155 = vadd.f32 %v2091, %v592
        %v2156 = vadd.f32 %v2092, %v593
        %v2157 = vadd.f32 %v2093, %v594
        %v2158 = vadd.f32 %v2094, %v595
        %v2159 = vadd.f32 %v2095, %v596
        %v2160 = vadd.f32 %v2096, %v597
        %v2161 = vadd.f32 %v2097, %v598
        %v2162 = vadd.f32 %v2098, %v599
        %v2163 = vadd.f32 %v2099, %v600
        %v2164 = vadd.f32 %v2100, %v601
        %v2165 = vadd.f32 %v2101, %v602
        %v2166 = vadd.f32 %v2102, %v603
        %v2167 = vadd.f32 %v2103, %v604
        %v2168 = vadd.f32 %v2104, %v605
        %v2169 = vadd.f32 %v2105, %v606
        %v2170 = vadd.f32 %v2106, %v607
        %v2171 = vadd.f32 %v2107, %v608
        %v2172 = vadd.f32 %v2108, %v609
        %v2173 = vadd.f32 %v2109, %v610
        %v2174 = vadd.f32 %v2110, %v611
        %v2175 = vadd.f32 %v2111, %v612
        %v2176 = vadd.f32 %v2112, %v613
        %v2177 = vadd.f32 %v2113, %v614
        %v2178 = vadd.f32 %v2114, %v615
        %v2179 = vadd.f32 %v2115, %v616
        %v2180 = vadd.f32 %v2116, %v617
        %v2181 = vadd.f32 %v2117, %v618
        %v2182 = vadd.f32 %v2118, %v619
        %v2183 = vadd.f32 %v2119, %v620
        %v2184 = vadd.f32 %v2120, %v621
        %v2185 = vadd.f32 %v2121, %v622
        %v2186 = vadd.f32 %v2122, %v623
        %v2187 = vadd.f32 %v2123, %v624
        %v2188 = vadd.f32 %v2124, %v625
        %v2189 = vadd.f32 %v2125, %v626
        %v2190 = vadd.f32 %v2126, %v627
        %v2191 = vadd.f32 %v2127, %v628
        %v2192 = vadd.f32 %v2128, %v629
        %v2193 = vadd.f32 %v2129, %v630
        %v2194 = vadd.f32 %v2130, %v631
        %v2195 = vadd.f32 %v2131, %v632
        %v2196 = vadd.f32 %v2132, %v633
        %v2197 = vadd.f32 %v2133, %v634
        %v2198 = vadd.f32 %v2134, %v635
        %v2199 = vadd.f32 %v2135, %v636
        %v2200 = vmax.f32 %v2136, %v2137
        %2201 = vmax.xlane.f32.xlu0 %v2200
        %v2202 = vpop.xlane.xlu0 %2201
        %v2203 = vmax.f32 %v2138, %v2139
        %2204 = vmax.xlane.f32.xlu0 %v2203
        %v2205 = vpop.xlane.xlu0 %2204
        %v2206 = vmax.f32 %v2140, %v2141
        %2207 = vmax.xlane.f32.xlu0 %v2206
        %v2208 = vpop.xlane.xlu0 %2207
        %v2209 = vmax.f32 %v2142, %v2143
        %2210 = vmax.xlane.f32.xlu0 %v2209
        %v2211 = vpop.xlane.xlu0 %2210
        %v2212 = vmax.f32 %v2144, %v2145
        %2213 = vmax.xlane.f32.xlu0 %v2212
        %v2214 = vpop.xlane.xlu0 %2213
        %v2215 = vmax.f32 %v2146, %v2147
        %2216 = vmax.xlane.f32.xlu0 %v2215
        %v2217 = vpop.xlane.xlu0 %2216
        %v2218 = vmax.f32 %v2148, %v2149
        %2219 = vmax.xlane.f32.xlu0 %v2218
        %v2220 = vpop.xlane.xlu0 %2219
        %v2221 = vmax.f32 %v2150, %v2151
        %2222 = vmax.xlane.f32.xlu0 %v2221
        %v2223 = vpop.xlane.xlu0 %2222
        %v2224 = vmax.f32 %v2152, %v2153
        %2225 = vmax.xlane.f32.xlu0 %v2224
        %v2226 = vpop.xlane.xlu0 %2225
        %v2227 = vmax.f32 %v2154, %v2155
        %2228 = vmax.xlane.f32.xlu0 %v2227
        %v2229 = vpop.xlane.xlu0 %2228
        %v2230 = vmax.f32 %v2156, %v2157
        %2231 = vmax.xlane.f32.xlu0 %v2230
        %v2232 = vpop.xlane.xlu0 %2231
        %v2233 = vmax.f32 %v2158, %v2159
        %2234 = vmax.xlane.f32.xlu0 %v2233
        %v2235 = vpop.xlane.xlu0 %2234
        %v2236 = vmax.f32 %v2160, %v2161
        %2237 = vmax.xlane.f32.xlu0 %v2236
        %v2238 = vpop.xlane.xlu0 %2237
        %v2239 = vmax.f32 %v2162, %v2163
        %2240 = vmax.xlane.f32.xlu0 %v2239
        %v2241 = vpop.xlane.xlu0 %2240
        %v2242 = vmax.f32 %v2164, %v2165
        %2243 = vmax.xlane.f32.xlu0 %v2242
        %v2244 = vpop.xlane.xlu0 %2243
        %v2245 = vmax.f32 %v2166, %v2167
        %2246 = vmax.xlane.f32.xlu0 %v2245
        %v2247 = vpop.xlane.xlu0 %2246
        %v2248 = vmax.f32 %v2168, %v2169
        %2249 = vmax.xlane.f32.xlu0 %v2248
        %v2250 = vpop.xlane.xlu0 %2249
        %v2251 = vmax.f32 %v2170, %v2171
        %2252 = vmax.xlane.f32.xlu0 %v2251
        %v2253 = vpop.xlane.xlu0 %2252
        %v2254 = vmax.f32 %v2172, %v2173
        %2255 = vmax.xlane.f32.xlu0 %v2254
        %v2256 = vpop.xlane.xlu0 %2255
        %v2257 = vmax.f32 %v2174, %v2175
        %2258 = vmax.xlane.f32.xlu0 %v2257
        %v2259 = vpop.xlane.xlu0 %2258
        %v2260 = vmax.f32 %v2176, %v2177
        %2261 = vmax.xlane.f32.xlu0 %v2260
        %v2262 = vpop.xlane.xlu0 %2261
        %v2263 = vmax.f32 %v2178, %v2179
        %2264 = vmax.xlane.f32.xlu0 %v2263
        %v2265 = vpop.xlane.xlu0 %2264
        %v2266 = vmax.f32 %v2180, %v2181
        %2267 = vmax.xlane.f32.xlu0 %v2266
        %v2268 = vpop.xlane.xlu0 %2267
        %v2269 = vmax.f32 %v2182, %v2183
        %2270 = vmax.xlane.f32.xlu0 %v2269
        %v2271 = vpop.xlane.xlu0 %2270
        %v2272 = vmax.f32 %v2184, %v2185
        %2273 = vmax.xlane.f32.xlu0 %v2272
        %v2274 = vpop.xlane.xlu0 %2273
        %v2275 = vmax.f32 %v2186, %v2187
        %2276 = vmax.xlane.f32.xlu0 %v2275
        %v2277 = vpop.xlane.xlu0 %2276
        %v2278 = vmax.f32 %v2188, %v2189
        %2279 = vmax.xlane.f32.xlu0 %v2278
        %v2280 = vpop.xlane.xlu0 %2279
        %v2281 = vmax.f32 %v2190, %v2191
        %2282 = vmax.xlane.f32.xlu0 %v2281
        %v2283 = vpop.xlane.xlu0 %2282
        %v2284 = vmax.f32 %v2192, %v2193
        %2285 = vmax.xlane.f32.xlu0 %v2284
        %v2286 = vpop.xlane.xlu0 %2285
        %v2287 = vmax.f32 %v2194, %v2195
        %2288 = vmax.xlane.f32.xlu0 %v2287
        %v2289 = vpop.xlane.xlu0 %2288
        %v2290 = vmax.f32 %v2196, %v2197
        %2291 = vmax.xlane.f32.xlu0 %v2290
        %v2292 = vpop.xlane.xlu0 %2291
        %v2293 = vmax.f32 %v2198, %v2199
        %2294 = vmax.xlane.f32.xlu0 %v2293
        %v2295 = vpop.xlane.xlu0 %2294
        %v2296 = vsub.f32 %v2136, %v2202
        %v2297 = vsub.f32 %v2137, %v2202
        %v2298 = vsub.f32 %v2138, %v2205
        %v2299 = vsub.f32 %v2139, %v2205
        %v2300 = vsub.f32 %v2140, %v2208
        %v2301 = vsub.f32 %v2141, %v2208
        %v2302 = vsub.f32 %v2142, %v2211
        %v2303 = vsub.f32 %v2143, %v2211
        %v2304 = vsub.f32 %v2144, %v2214
        %v2305 = vsub.f32 %v2145, %v2214
        %v2306 = vsub.f32 %v2146, %v2217
        %v2307 = vsub.f32 %v2147, %v2217
        %v2308 = vsub.f32 %v2148, %v2220
        %v2309 = vsub.f32 %v2149, %v2220
        %v2310 = vsub.f32 %v2150, %v2223
        %v2311 = vsub.f32 %v2151, %v2223
        %v2312 = vsub.f32 %v2152, %v2226
        %v2313 = vsub.f32 %v2153, %v2226
        %v2314 = vsub.f32 %v2154, %v2229
        %v2315 = vsub.f32 %v2155, %v2229
        %v2316 = vsub.f32 %v2156, %v2232
        %v2317 = vsub.f32 %v2157, %v2232
        %v2318 = vsub.f32 %v2158, %v2235
        %v2319 = vsub.f32 %v2159, %v2235
        %v2320 = vsub.f32 %v2160, %v2238
        %v2321 = vsub.f32 %v2161, %v2238
        %v2322 = vsub.f32 %v2162, %v2241
        %v2323 = vsub.f32 %v2163, %v2241
        %v2324 = vsub.f32 %v2164, %v2244
        %v2325 = vsub.f32 %v2165, %v2244
        %v2326 = vsub.f32 %v2166, %v2247
        %v2327 = vsub.f32 %v2167, %v2247
        %v2328 = vsub.f32 %v2168, %v2250
        %v2329 = vsub.f32 %v2169, %v2250
        %v2330 = vsub.f32 %v2170, %v2253
        %v2331 = vsub.f32 %v2171, %v2253
        %v2332 = vsub.f32 %v2172, %v2256
        %v2333 = vsub.f32 %v2173, %v2256
        %v2334 = vsub.f32 %v2174, %v2259
        %v2335 = vsub.f32 %v2175, %v2259
        %v2336 = vsub.f32 %v2176, %v2262
        %v2337 = vsub.f32 %v2177, %v2262
        %v2338 = vsub.f32 %v2178, %v2265
        %v2339 = vsub.f32 %v2179, %v2265
        %v2340 = vsub.f32 %v2180, %v2268
        %v2341 = vsub.f32 %v2181, %v2268
        %v2342 = vsub.f32 %v2182, %v2271
        %v2343 = vsub.f32 %v2183, %v2271
        %v2344 = vsub.f32 %v2184, %v2274
        %v2345 = vsub.f32 %v2185, %v2274
        %v2346 = vsub.f32 %v2186, %v2277
        %v2347 = vsub.f32 %v2187, %v2277
        %v2348 = vsub.f32 %v2188, %v2280
        %v2349 = vsub.f32 %v2189, %v2280
        %v2350 = vsub.f32 %v2190, %v2283
        %v2351 = vsub.f32 %v2191, %v2283
        %v2352 = vsub.f32 %v2192, %v2286
        %v2353 = vsub.f32 %v2193, %v2286
        %v2354 = vsub.f32 %v2194, %v2289
        %v2355 = vsub.f32 %v2195, %v2289
        %v2356 = vsub.f32 %v2196, %v2292
        %v2357 = vsub.f32 %v2197, %v2292
        %v2358 = vsub.f32 %v2198, %v2295
        %v2359 = vsub.f32 %v2199, %v2295
        %v2360 = vmul.f32 %v2296, 1.442695
        %v2361 = vpow.pop %v2360
        %v2362 = vmul.f32 %v2297, 1.442695
        %v2363 = vpow.pop %v2362
        %v2364 = vmul.f32 %v2298, 1.442695
        %v2365 = vpow.pop %v2364
        %v2366 = vmul.f32 %v2299, 1.442695
        %v2367 = vpow.pop %v2366
        %v2368 = vmul.f32 %v2300, 1.442695
        %v2369 = vpow.pop %v2368
        %v2370 = vmul.f32 %v2301, 1.442695
        %v2371 = vpow.pop %v2370
        %v2372 = vmul.f32 %v2302, 1.442695
        %v2373 = vpow.pop %v2372
        %v2374 = vmul.f32 %v2303, 1.442695
        %v2375 = vpow.pop %v2374
        %v2376 = vmul.f32 %v2304, 1.442695
        %v2377 = vpow.pop %v2376
        %v2378 = vmul.f32 %v2305, 1.442695
        %v2379 = vpow.pop %v2378
        %v2380 = vmul.f32 %v2306, 1.442695
        %v2381 = vpow.pop %v2380
        %v2382 = vmul.f32 %v2307, 1.442695
        %v2383 = vpow.pop %v2382
        %v2384 = vmul.f32 %v2308, 1.442695
        %v2385 = vpow.pop %v2384
        %v2386 = vmul.f32 %v2309, 1.442695
        %v2387 = vpow.pop %v2386
        %v2388 = vmul.f32 %v2310, 1.442695
        %v2389 = vpow.pop %v2388
        %v2390 = vmul.f32 %v2311, 1.442695
        %v2391 = vpow.pop %v2390
        %v2392 = vmul.f32 %v2312, 1.442695
        %v2393 = vpow.pop %v2392
        %v2394 = vmul.f32 %v2313, 1.442695
        %v2395 = vpow.pop %v2394
        %v2396 = vmul.f32 %v2314, 1.442695
        %v2397 = vpow.pop %v2396
        %v2398 = vmul.f32 %v2315, 1.442695
        %v2399 = vpow.pop %v2398
        %v2400 = vmul.f32 %v2316, 1.442695
        %v2401 = vpow.pop %v2400
        %v2402 = vmul.f32 %v2317, 1.442695
        %v2403 = vpow.pop %v2402
        %v2404 = vmul.f32 %v2318, 1.442695
        %v2405 = vpow.pop %v2404
        %v2406 = vmul.f32 %v2319, 1.442695
        %v2407 = vpow.pop %v2406
        %v2408 = vmul.f32 %v2320, 1.442695
        %v2409 = vpow.pop %v2408
        %v2410 = vmul.f32 %v2321, 1.442695
        %v2411 = vpow.pop %v2410
        %v2412 = vmul.f32 %v2322, 1.442695
        %v2413 = vpow.pop %v2412
        %v2414 = vmul.f32 %v2323, 1.442695
        %v2415 = vpow.pop %v2414
        %v2416 = vmul.f32 %v2324, 1.442695
        %v2417 = vpow.pop %v2416
        %v2418 = vmul.f32 %v2325, 1.442695
        %v2419 = vpow.pop %v2418
        %v2420 = vmul.f32 %v2326, 1.442695
        %v2421 = vpow.pop %v2420
        %v2422 = vmul.f32 %v2327, 1.442695
        %v2423 = vpow.pop %v2422
        %v2424 = vmul.f32 %v2328, 1.442695
        %v2425 = vpow.pop %v2424
        %v2426 = vmul.f32 %v2329, 1.442695
        %v2427 = vpow.pop %v2426
        %v2428 = vmul.f32 %v2330, 1.442695
        %v2429 = vpow.pop %v2428
        %v2430 = vmul.f32 %v2331, 1.442695
        %v2431 = vpow.pop %v2430
        %v2432 = vmul.f32 %v2332, 1.442695
        %v2433 = vpow.pop %v2432
        %v2434 = vmul.f32 %v2333, 1.442695
        %v2435 = vpow.pop %v2434
        %v2436 = vmul.f32 %v2334, 1.442695
        %v2437 = vpow.pop %v2436
        %v2438 = vmul.f32 %v2335, 1.442695
        %v2439 = vpow.pop %v2438
        %v2440 = vmul.f32 %v2336, 1.442695
        %v2441 = vpow.pop %v2440
        %v2442 = vmul.f32 %v2337, 1.442695
        %v2443 = vpow.pop %v2442
        %v2444 = vmul.f32 %v2338, 1.442695
        %v2445 = vpow.pop %v2444
        %v2446 = vmul.f32 %v2339, 1.442695
        %v2447 = vpow.pop %v2446
        %v2448 = vmul.f32 %v2340, 1.442695
        %v2449 = vpow.pop %v2448
        %v2450 = vmul.f32 %v2341, 1.442695
        %v2451 = vpow.pop %v2450
        %v2452 = vmul.f32 %v2342, 1.442695
        %v2453 = vpow.pop %v2452
        %v2454 = vmul.f32 %v2343, 1.442695
        %v2455 = vpow.pop %v2454
        %v2456 = vmul.f32 %v2344, 1.442695
        %v2457 = vpow.pop %v2456
        %v2458 = vmul.f32 %v2345, 1.442695
        %v2459 = vpow.pop %v2458
        %v2460 = vmul.f32 %v2346, 1.442695
        %v2461 = vpow.pop %v2460
        %v2462 = vmul.f32 %v2347, 1.442695
        %v2463 = vpow.pop %v2462
        %v2464 = vmul.f32 %v2348, 1.442695
        %v2465 = vpow.pop %v2464
        %v2466 = vmul.f32 %v2349, 1.442695
        %v2467 = vpow.pop %v2466
        %v2468 = vmul.f32 %v2350, 1.442695
        %v2469 = vpow.pop %v2468
        %v2470 = vmul.f32 %v2351, 1.442695
        %v2471 = vpow.pop %v2470
        %v2472 = vmul.f32 %v2352, 1.442695
        %v2473 = vpow.pop %v2472
        %v2474 = vmul.f32 %v2353, 1.442695
        %v2475 = vpow.pop %v2474
        %v2476 = vmul.f32 %v2354, 1.442695
        %v2477 = vpow.pop %v2476
        %v2478 = vmul.f32 %v2355, 1.442695
        %v2479 = vpow.pop %v2478
        %v2480 = vmul.f32 %v2356, 1.442695
        %v2481 = vpow.pop %v2480
        %v2482 = vmul.f32 %v2357, 1.442695
        %v2483 = vpow.pop %v2482
        %v2484 = vmul.f32 %v2358, 1.442695
        %v2485 = vpow.pop %v2484
        %v2486 = vmul.f32 %v2359, 1.442695
        %v2487 = vpow.pop %v2486
        %v2488 = vadd.f32 %v2361, %v2363
        %2489 = vadd.xlane.f32.xlu0 %v2488
        %v2490 = vpop.xlane.xlu0 %2489
        %v2491 = vadd.f32 %v2365, %v2367
        %2492 = vadd.xlane.f32.xlu0 %v2491
        %v2493 = vpop.xlane.xlu0 %2492
        %v2494 = vadd.f32 %v2369, %v2371
        %2495 = vadd.xlane.f32.xlu0 %v2494
        %v2496 = vpop.xlane.xlu0 %2495
        %v2497 = vadd.f32 %v2373, %v2375
        %2498 = vadd.xlane.f32.xlu0 %v2497
        %v2499 = vpop.xlane.xlu0 %2498
        %v2500 = vadd.f32 %v2377, %v2379
        %2501 = vadd.xlane.f32.xlu0 %v2500
        %v2502 = vpop.xlane.xlu0 %2501
        %v2503 = vadd.f32 %v2381, %v2383
        %2504 = vadd.xlane.f32.xlu0 %v2503
        %v2505 = vpop.xlane.xlu0 %2504
        %v2506 = vadd.f32 %v2385, %v2387
        %2507 = vadd.xlane.f32.xlu0 %v2506
        %v2508 = vpop.xlane.xlu0 %2507
        %v2509 = vadd.f32 %v2389, %v2391
        %2510 = vadd.xlane.f32.xlu0 %v2509
        %v2511 = vpop.xlane.xlu0 %2510
        %v2512 = vadd.f32 %v2393, %v2395
        %2513 = vadd.xlane.f32.xlu0 %v2512
        %v2514 = vpop.xlane.xlu0 %2513
        %v2515 = vadd.f32 %v2397, %v2399
        %2516 = vadd.xlane.f32.xlu0 %v2515
        %v2517 = vpop.xlane.xlu0 %2516
        %v2518 = vadd.f32 %v2401, %v2403
        %2519 = vadd.xlane.f32.xlu0 %v2518
        %v2520 = vpop.xlane.xlu0 %2519
        %v2521 = vadd.f32 %v2405, %v2407
        %2522 = vadd.xlane.f32.xlu0 %v2521
        %v2523 = vpop.xlane.xlu0 %2522
        %v2524 = vadd.f32 %v2409, %v2411
        %2525 = vadd.xlane.f32.xlu0 %v2524
        %v2526 = vpop.xlane.xlu0 %2525
        %v2527 = vadd.f32 %v2413, %v2415
        %2528 = vadd.xlane.f32.xlu0 %v2527
        %v2529 = vpop.xlane.xlu0 %2528
        %v2530 = vadd.f32 %v2417, %v2419
        %2531 = vadd.xlane.f32.xlu0 %v2530
        %v2532 = vpop.xlane.xlu0 %2531
        %v2533 = vadd.f32 %v2421, %v2423
        %2534 = vadd.xlane.f32.xlu0 %v2533
        %v2535 = vpop.xlane.xlu0 %2534
        %v2536 = vadd.f32 %v2425, %v2427
        %2537 = vadd.xlane.f32.xlu0 %v2536
        %v2538 = vpop.xlane.xlu0 %2537
        %v2539 = vadd.f32 %v2429, %v2431
        %2540 = vadd.xlane.f32.xlu0 %v2539
        %v2541 = vpop.xlane.xlu0 %2540
        %v2542 = vadd.f32 %v2433, %v2435
        %2543 = vadd.xlane.f32.xlu0 %v2542
        %v2544 = vpop.xlane.xlu0 %2543
        %v2545 = vadd.f32 %v2437, %v2439
        %2546 = vadd.xlane.f32.xlu0 %v2545
        %v2547 = vpop.xlane.xlu0 %2546
        %v2548 = vadd.f32 %v2441, %v2443
        %2549 = vadd.xlane.f32.xlu0 %v2548
        %v2550 = vpop.xlane.xlu0 %2549
        %v2551 = vadd.f32 %v2445, %v2447
        %2552 = vadd.xlane.f32.xlu0 %v2551
        %v2553 = vpop.xlane.xlu0 %2552
        %v2554 = vadd.f32 %v2449, %v2451
        %2555 = vadd.xlane.f32.xlu0 %v2554
        %v2556 = vpop.xlane.xlu0 %2555
        %v2557 = vadd.f32 %v2453, %v2455
        %2558 = vadd.xlane.f32.xlu0 %v2557
        %v2559 = vpop.xlane.xlu0 %2558
        %v2560 = vadd.f32 %v2457, %v2459
        %2561 = vadd.xlane.f32.xlu0 %v2560
        %v2562 = vpop.xlane.xlu0 %2561
        %v2563 = vadd.f32 %v2461, %v2463
        %2564 = vadd.xlane.f32.xlu0 %v2563
        %v2565 = vpop.xlane.xlu0 %2564
        %v2566 = vadd.f32 %v2465, %v2467
        %2567 = vadd.xlane.f32.xlu0 %v2566
        %v2568 = vpop.xlane.xlu0 %2567
        %v2569 = vadd.f32 %v2469, %v2471
        %2570 = vadd.xlane.f32.xlu0 %v2569
        %v2571 = vpop.xlane.xlu0 %2570
        %v2572 = vadd.f32 %v2473, %v2475
        %2573 = vadd.xlane.f32.xlu0 %v2572
        %v2574 = vpop.xlane.xlu0 %2573
        %v2575 = vadd.f32 %v2477, %v2479
        %2576 = vadd.xlane.f32.xlu0 %v2575
        %v2577 = vpop.xlane.xlu0 %2576
        %v2578 = vadd.f32 %v2481, %v2483
        %2579 = vadd.xlane.f32.xlu0 %v2578
        %v2580 = vpop.xlane.xlu0 %2579
        %v2581 = vadd.f32 %v2485, %v2487
        %2582 = vadd.xlane.f32.xlu0 %v2581
        %v2583 = vpop.xlane.xlu0 %2582
        %v2584 = vrcp.pop %v2490
        %v2585 = vrcp.pop %v2493
        %v2586 = vrcp.pop %v2496
        %v2587 = vrcp.pop %v2499
        %v2588 = vrcp.pop %v2502
        %v2589 = vrcp.pop %v2505
        %v2590 = vrcp.pop %v2508
        %v2591 = vrcp.pop %v2511
        %v2592 = vrcp.pop %v2514
        %v2593 = vrcp.pop %v2517
        %v2594 = vrcp.pop %v2520
        %v2595 = vrcp.pop %v2523
        %v2596 = vrcp.pop %v2526
        %v2597 = vrcp.pop %v2529
        %v2598 = vrcp.pop %v2532
        %v2599 = vrcp.pop %v2535
        %v2600 = vrcp.pop %v2538
        %v2601 = vrcp.pop %v2541
        %v2602 = vrcp.pop %v2544
        %v2603 = vrcp.pop %v2547
        %v2604 = vrcp.pop %v2550
        %v2605 = vrcp.pop %v2553
        %v2606 = vrcp.pop %v2556
        %v2607 = vrcp.pop %v2559
        %v2608 = vrcp.pop %v2562
        %v2609 = vrcp.pop %v2565
        %v2610 = vrcp.pop %v2568
        %v2611 = vrcp.pop %v2571
        %v2612 = vrcp.pop %v2574
        %v2613 = vrcp.pop %v2577
        %v2614 = vrcp.pop %v2580
        %v2615 = vrcp.pop %v2583
        %v2616 = vmul.f32 %v2361, %v2584
        %v2617 = vmul.f32 %v2363, %v2584
        %v2618 = vmul.f32 %v2365, %v2585
        %v2619 = vmul.f32 %v2367, %v2585
        %v2620 = vmul.f32 %v2369, %v2586
        %v2621 = vmul.f32 %v2371, %v2586
        %v2622 = vmul.f32 %v2373, %v2587
        %v2623 = vmul.f32 %v2375, %v2587
        %v2624 = vmul.f32 %v2377, %v2588
        %v2625 = vmul.f32 %v2379, %v2588
        %v2626 = vmul.f32 %v2381, %v2589
        %v2627 = vmul.f32 %v2383, %v2589
        %v2628 = vmul.f32 %v2385, %v2590
        %v2629 = vmul.f32 %v2387, %v2590
        %v2630 = vmul.f32 %v2389, %v2591
        %v2631 = vmul.f32 %v2391, %v2591
        %v2632 = vmul.f32 %v2393, %v2592
        %v2633 = vmul.f32 %v2395, %v2592
        %v2634 = vmul.f32 %v2397, %v2593
        %v2635 = vmul.f32 %v2399, %v2593
        %v2636 = vmul.f32 %v2401, %v2594
        %v2637 = vmul.f32 %v2403, %v2594
        %v2638 = vmul.f32 %v2405, %v2595
        %v2639 = vmul.f32 %v2407, %v2595
        %v2640 = vmul.f32 %v2409, %v2596
        %v2641 = vmul.f32 %v2411, %v2596
        %v2642 = vmul.f32 %v2413, %v2597
        %v2643 = vmul.f32 %v2415, %v2597
        %v2644 = vmul.f32 %v2417, %v2598
        %v2645 = vmul.f32 %v2419, %v2598
        %v2646 = vmul.f32 %v2421, %v2599
        %v2647 = vmul.f32 %v2423, %v2599
        %v2648 = vmul.f32 %v2425, %v2600
        %v2649 = vmul.f32 %v2427, %v2600
        %v2650 = vmul.f32 %v2429, %v2601
        %v2651 = vmul.f32 %v2431, %v2601
        %v2652 = vmul.f32 %v2433, %v2602
        %v2653 = vmul.f32 %v2435, %v2602
        %v2654 = vmul.f32 %v2437, %v2603
        %v2655 = vmul.f32 %v2439, %v2603
        %v2656 = vmul.f32 %v2441, %v2604
        %v2657 = vmul.f32 %v2443, %v2604
        %v2658 = vmul.f32 %v2445, %v2605
        %v2659 = vmul.f32 %v2447, %v2605
        %v2660 = vmul.f32 %v2449, %v2606
        %v2661 = vmul.f32 %v2451, %v2606
        %v2662 = vmul.f32 %v2453, %v2607
        %v2663 = vmul.f32 %v2455, %v2607
        %v2664 = vmul.f32 %v2457, %v2608
        %v2665 = vmul.f32 %v2459, %v2608
        %v2666 = vmul.f32 %v2461, %v2609
        %v2667 = vmul.f32 %v2463, %v2609
        %v2668 = vmul.f32 %v2465, %v2610
        %v2669 = vmul.f32 %v2467, %v2610
        %v2670 = vmul.f32 %v2469, %v2611
        %v2671 = vmul.f32 %v2471, %v2611
        %v2672 = vmul.f32 %v2473, %v2612
        %v2673 = vmul.f32 %v2475, %v2612
        %v2674 = vmul.f32 %v2477, %v2613
        %v2675 = vmul.f32 %v2479, %v2613
        %v2676 = vmul.f32 %v2481, %v2614
        %v2677 = vmul.f32 %v2483, %v2614
        %v2678 = vmul.f32 %v2485, %v2615
        %v2679 = vmul.f32 %v2487, %v2615
        %v2680 = vpack.c.bf16 %v2618, %v2616
        %v2681 = vpack.c.bf16 %v2619, %v2617
        %v2682 = vpack.c.bf16 %v2622, %v2620
        %v2683 = vpack.c.bf16 %v2623, %v2621
        %v2684 = vpack.c.bf16 %v2626, %v2624
        %v2685 = vpack.c.bf16 %v2627, %v2625
        %v2686 = vpack.c.bf16 %v2630, %v2628
        %v2687 = vpack.c.bf16 %v2631, %v2629
        %v2688 = vpack.c.bf16 %v2634, %v2632
        %v2689 = vpack.c.bf16 %v2635, %v2633
        %v2690 = vpack.c.bf16 %v2638, %v2636
        %v2691 = vpack.c.bf16 %v2639, %v2637
        %v2692 = vpack.c.bf16 %v2642, %v2640
        %v2693 = vpack.c.bf16 %v2643, %v2641
        %v2694 = vpack.c.bf16 %v2646, %v2644
        %v2695 = vpack.c.bf16 %v2647, %v2645
        %v2696 = vpack.c.bf16 %v2650, %v2648
        %v2697 = vpack.c.bf16 %v2651, %v2649
        %v2698 = vpack.c.bf16 %v2654, %v2652
        %v2699 = vpack.c.bf16 %v2655, %v2653
        %v2700 = vpack.c.bf16 %v2658, %v2656
        %v2701 = vpack.c.bf16 %v2659, %v2657
        %v2702 = vpack.c.bf16 %v2662, %v2660
        %v2703 = vpack.c.bf16 %v2663, %v2661
        %v2704 = vpack.c.bf16 %v2666, %v2664
        %v2705 = vpack.c.bf16 %v2667, %v2665
        %v2706 = vpack.c.bf16 %v2670, %v2668
        %v2707 = vpack.c.bf16 %v2671, %v2669
        %v2708 = vpack.c.bf16 %v2674, %v2672
        %v2709 = vpack.c.bf16 %v2675, %v2673
        %v2710 = vpack.c.bf16 %v2678, %v2676
        %v2711 = vpack.c.bf16 %v2679, %v2677
        %v2714 = vrot.slane %v1604, 2
        %v2715 = vrot.slane %v1605, 2
        %2718 = vmatprep.subr.bf16.mxu0 %v2681
        %2719 = vmatpush1.bf16.xpose.msra.mxu0 %v2680
        %2720 = vmatprep.subr.bf16.mxu0 %v2683
        %2721 = vmatpush1.bf16.xpose.msra.mxu0 %v2682
        %2722 = vmatprep.subr.bf16.mxu0 %v2685
        %2723 = vmatpush1.bf16.xpose.msra.mxu0 %v2684
        %2724 = vmatprep.subr.bf16.mxu0 %v2687
        %2725 = vmatpush1.bf16.xpose.msra.mxu0 %v2686
        %2726 = vmatprep.subr.bf16.mxu0 %v2689
        %2727 = vmatpush1.bf16.xpose.msra.mxu0 %v2688
        %2728 = vmatprep.subr.bf16.mxu0 %v2691
        %2729 = vmatpush1.bf16.xpose.msra.mxu0 %v2690
        %2730 = vmatprep.subr.bf16.mxu0 %v2693
        %2731 = vmatpush1.bf16.xpose.msra.mxu0 %v2692
        %2732 = vmatprep.subr.bf16.mxu0 %v2695
        %2733 = vmatpush1.bf16.xpose.msra.mxu0 %v2694
        %2734 = vmatprep.subr.bf16.mxu0 %v2697
        %2735 = vmatpush1.bf16.xpose.msra.mxu0 %v2696
        %2736 = vmatprep.subr.bf16.mxu0 %v2699
        %2737 = vmatpush1.bf16.xpose.msra.mxu0 %v2698
        %2738 = vmatprep.subr.bf16.mxu0 %v2701
        %2739 = vmatpush1.bf16.xpose.msra.mxu0 %v2700
        %2740 = vmatprep.subr.bf16.mxu0 %v2703
        %2741 = vmatpush1.bf16.xpose.msra.mxu0 %v2702
        %2742 = vmatprep.subr.bf16.mxu0 %v2705
        %2743 = vmatpush1.bf16.xpose.msra.mxu0 %v2704
        %2744 = vmatprep.subr.bf16.mxu0 %v2707
        %2745 = vmatpush1.bf16.xpose.msra.mxu0 %v2706
        %2746 = vmatprep.subr.bf16.mxu0 %v2709
        %2747 = vmatpush1.bf16.xpose.msra.mxu0 %v2708
        %2748 = vmatprep.subr.bf16.mxu0 %v2711
        %2749 = vmatpush1.bf16.xpose.msra.mxu0 %v2710
        %2750 = vmatprep.mubr.bf16.mxu0 %v2715
        %2751 = vmatmul.mubr.bf16.gmra.mrb[0].mxu0 %v2714
        %v2752 = vpop.f32.mrb[0].mxu0
        %v2753 = vadd.f32 0.0, %v2752
        %v2754 = vpop.f32.mrb[0].mxu0
        %v2755 = vadd.f32 0.0, %v2754
        %v2756 = vpop.f32.mrb[0].mxu0
        %v2757 = vpop.f32.mrb[0].mxu0
        %2758 = vdwg.mxu0
        %v2761 = vrot.slane %v2753, 4
        %v2762 = vrot.slane %v2755, 4
        %2765 = vst [vmem:[#allocation2] sm:$0xf0] %v2761
        %2766 = vst [vmem:[#allocation2 + $0x8] sm:$0xf0] %v2762
        %v2767 = vld [vmem:[%s3] sm:$0xff]
        %v2768 = vld [vmem:[#allocation2] sm:$0xff]
        %v2769 = vld [vmem:[#allocation2 + $0x8] sm:$0xff]
        %v2770 = vld [vmem:[%s4] sm:$0xff]
        %2772 = vset.pattern.permute.xlu0 0
        %2773 = vperm.xlu0 %2772, %v2770
        %v2774 = vpop.permute.xlu0 %2773
        %vm2776 = vcmask 64512
        %v2778 = vsel %vm2776, %v2767, 0
        %2780 = vmatprep.subr.mxu0 %v2769
        %2781 = vmatpush1.msra.mxu0 %v2768
        %2782 = vmatprep.subr.mxu0 0.0
        %2783 = vmatpush1.msra.mxu0 0.0
        %2784 = vmatprep.subr.mxu0 0.0
        %2785 = vmatpush1.msra.mxu0 0.0
        %2786 = vmatprep.subr.mxu0 0.0
        %2787 = vmatpush1.msra.mxu0 0.0
        %2788 = vmatprep.subr.mxu0 0.0
        %2789 = vmatpush1.msra.mxu0 0.0
        %2790 = vmatprep.subr.mxu0 0.0
        %2791 = vmatpush1.msra.mxu0 0.0
        %2792 = vmatprep.subr.mxu0 0.0
        %2793 = vmatpush1.msra.mxu0 0.0
        %2794 = vmatprep.subr.mxu0 0.0
        %2795 = vmatpush1.msra.mxu0 0.0
        %2796 = vmatprep.subr.mxu0 0.0
        %2797 = vmatpush1.msra.mxu0 0.0
        %2798 = vmatprep.subr.mxu0 0.0
        %2799 = vmatpush1.msra.mxu0 0.0
        %2800 = vmatprep.subr.mxu0 0.0
        %2801 = vmatpush1.msra.mxu0 0.0
        %2802 = vmatprep.subr.mxu0 0.0
        %2803 = vmatpush1.msra.mxu0 0.0
        %2804 = vmatprep.subr.mxu0 0.0
        %2805 = vmatpush1.msra.mxu0 0.0
        %2806 = vmatprep.subr.mxu0 0.0
        %2807 = vmatpush1.msra.mxu0 0.0
        %2808 = vmatprep.subr.mxu0 0.0
        %2809 = vmatpush1.msra.mxu0 0.0
        %2810 = vmatprep.subr.mxu0 0.0
        %2811 = vmatpush1.msra.mxu0 0.0
        %2812 = vmatprep.subr.mxu0 0.0
        %2813 = vmatpush1.msra.mxu0 0.0
        %2814 = vmatprep.subr.mxu0 0.0
        %2815 = vmatpush1.msra.mxu0 0.0
        %2816 = vmatprep.subr.mxu0 0.0
        %2817 = vmatpush1.msra.mxu0 0.0
        %2818 = vmatprep.subr.mxu0 0.0
        %2819 = vmatpush1.msra.mxu0 0.0
        %2820 = vmatprep.subr.mxu0 0.0
        %2821 = vmatpush1.msra.mxu0 0.0
        %2822 = vmatprep.subr.mxu0 0.0
        %2823 = vmatpush1.msra.mxu0 0.0
        %2824 = vmatprep.subr.mxu0 0.0
        %2825 = vmatpush1.msra.mxu0 0.0
        %2826 = vmatprep.subr.mxu0 0.0
        %2827 = vmatpush1.msra.mxu0 0.0
        %2828 = vmatprep.subr.mxu0 0.0
        %2829 = vmatpush1.msra.mxu0 0.0
        %2830 = vmatprep.subr.mxu0 0.0
        %2831 = vmatpush1.msra.mxu0 0.0
        %2832 = vmatprep.subr.mxu0 0.0
        %2833 = vmatpush1.msra.mxu0 0.0
        %2834 = vmatprep.subr.mxu0 0.0
        %2835 = vmatpush1.msra.mxu0 0.0
        %2836 = vmatprep.subr.mxu0 0.0
        %2837 = vmatpush1.msra.mxu0 0.0
        %2838 = vmatprep.subr.mxu0 0.0
        %2839 = vmatpush1.msra.mxu0 0.0
        %2840 = vmatprep.subr.mxu0 0.0
        %2841 = vmatpush1.msra.mxu0 0.0
        %2842 = vmatprep.subr.mxu0 0.0
        %2843 = vmatpush1.msra.mxu0 0.0
        %2844 = vmatprep.mubr.f32.mxu0 0.0
        %2845 = vmatmul.mubr.f32.gmra.mrb[0].mxu0 %v2778
        %v2846 = vpop.f32.mrb[0].mxu0
        %v2847 = vadd.f32 %v2774, %v2846
        %v2848 = vpop.f32.mrb[0].mxu0
        %v2849 = vadd.f32 %v2774, %v2848
        %2850 = vdwg.mxu0
        %2851 = vst [vmem:[%s217] sm:$0xff] %v2847
        %2852 = vst [vmem:[%s217 + $0x8] sm:$0xff] %v2849
        %s2853 = sand.u32 %s137, 1
        %s2854 = scalar_lea.sflag [#allocation4], %s2853
        %s2855 = sand.u32 %s137, 1
        %s2856 = smul.addr %s2855, 16
        %s2857 = scalar_lea.vmem [#allocation3], %s2856
        // Predicated region
        $region41: #{tpu_custom_call.1} parent=39 // pred_check
          %p2858 = pneg %p147
        $region42: #{tpu_custom_call.1} parent=39 // pred_check_branch
          %2860 = sbr.rel (%p2858) target = $region44
        $region43: #{tpu_custom_call.1} parent=39 // pred_region
          %s2862 = ssub.s32 256, 256
          %2863 = vsyncadd %s2854, %s2862
          %s2864 = smul.addr %s19, 2
          %s2865 = smul.addr %s2864, 128
          %s2866 = scalar_lea.hbm %s5, %s2865
          %s2868 = sshll.u32 %s2857, 4
          %s2869 = int_to_ptr.vmem [resolvable:$true] %s2868
          %2871 = dma.vmem_to_hbm [thread:$0]  %s2869, 256, %s2866, %s2854
        $region44: #{tpu_custom_call.1} parent=39 // pred_fallthru
          _
      $region40: #{tpu_custom_call.1} parent=5 // pred_fallthru
        _
      %p2872 = scmp.le.s32.totalorder 2, %s14
      // Predicated region
      $region45: #{tpu_custom_call.1} parent=5 // pred_check
        %p2873 = pneg %p2872
      $region46: #{tpu_custom_call.1} parent=5 // pred_check_branch
        %2875 = sbr.rel (%p2873) target = $region48
      $region47: #{tpu_custom_call.1} parent=5 // pred_region
        %s2876 = ssub.s32 %s14, 2
        // Predicated region
        $region49: #{tpu_custom_call.1} parent=47 // pred_check
          %p2877 = pneg %p153
        $region50: #{tpu_custom_call.1} parent=47 // pred_check_branch
          %2879 = sbr.rel (%p2877) target = $region52
        $region51: #{tpu_custom_call.1} parent=47 // pred_region
          %s2880 = sand.u32 %s138, 1
          %s2881 = scalar_lea.sflag [#allocation4], %s2880
          %s2882 = sand.u32 %s138, 1
          %s2883 = smul.addr %s2882, 16
          %s2884 = scalar_lea.vmem [#allocation3], %s2883
          %2885 = dma.done %s2881, 256
        $region52: #{tpu_custom_call.1} parent=47 // pred_fallthru
          _
      $region48: #{tpu_custom_call.1} parent=5 // pred_fallthru
        _
    $region6: #{tpu_custom_call.1} parent=1 // loop_footer
      %s18 = sadd.s32 1, %s14
    $region7: #{tpu_custom_call.1} parent=1 // loop_footer_branch
      %13 = sbr.rel target = $region3
    $region8: #{tpu_custom_call.1} parent=1 // loop_exit
      _
    %2886 = vsyncpa [#allocation4], 1
    %s2887 = scalar_lea.sflag [#allocation4], 1
    %2888 = vsyncpa %s2887, 1

</llo_original>
